<compile_context>
chip_gen: v7x
topology: tpu7x:2x2x1
jax: 0.10.0
libtpu: 0.0.40
codegen_flags: <defaults>
</compile_context>

<pallas_src>
import functools
import math

import jax
import jax.numpy as jnp
from jax import lax
from jax.experimental import pallas as pl
from jax.experimental.pallas import tpu as pltpu

# ----------------------------------------------------------------------------
# PoincareBall constants (comment_curvature c == 1.0)
# ----------------------------------------------------------------------------
C = 1.0
SQRT_C = math.sqrt(C)
MIN_NORM = 1e-15
PROJ_EPS = 4e-3                      # float32 eps used by PoincareBall.proj
MAXNORM = (1.0 - PROJ_EPS) / SQRT_C
VMEM_LIMIT = 32 * 1024 * 1024        # explicit budget (fits v5e/v6e/v7x scoped VMEM)


def _round_up(x, m):
    return ((x + m - 1) // m) * m


# ----------------------------------------------------------------------------
# In-kernel math helpers
# ----------------------------------------------------------------------------
def _artanh(x):
    x = jnp.clip(x, -1.0 + 1e-7, 1.0 - 1e-7)
    return 0.5 * jnp.log((1.0 + x) / (1.0 - x))


def _sq_norm_inv(x):
    """Returns (raw squared norm, clamped norm, 1/clamped_norm) along last axis."""
    sq_raw = jnp.sum(x * x, axis=-1, keepdims=True)
    sq = jnp.maximum(sq_raw, MIN_NORM * MIN_NORM)
    inv = lax.rsqrt(sq)
    return sq_raw, sq * inv, inv


# ----------------------------------------------------------------------------
# Kernel A: HypLinear (mobius_matvec + hyperbolic bias add + proj) followed by
#           HypAgg's logmap0.  Row-tiled; outputs bf16 tangent features.
# ----------------------------------------------------------------------------
def hyp_linear_tangent_kernel(x_ref, w_ref, hb_ref, out_ref, *, lift_input):
    x = x_ref[...]
    _, x_norm, inv_x_norm = _sq_norm_inv(x)

    if lift_input:
        # proj(expmap0(proj_tan0(x))): lift Euclidean features onto the ball.
        # Result norm is known analytically -> no second reduction.
        t = jnp.tanh(SQRT_C * x_norm) * (1.0 / SQRT_C)
        xh_norm = jnp.maximum(jnp.minimum(t, MAXNORM), MIN_NORM)
        x = x * (xh_norm * inv_x_norm)
        inv_xh_norm = pl.reciprocal(xh_norm, approx=True)
    else:
        xh_norm = x_norm
        inv_xh_norm = inv_x_norm

    # mobius_matvec(w, x) fused with the following proj.
    mx = jnp.dot(x, w_ref[...], preferred_element_type=jnp.float32)
    mx_sq_raw, mx_norm, inv_mx_norm = _sq_norm_inv(mx)
    r = (mx_norm * inv_xh_norm) * _artanh(SQRT_C * xh_norm)
    mv_norm = jnp.minimum(jnp.tanh(r) * (1.0 / SQRT_C), MAXNORM)
    zero_row = mx_sq_raw <= MIN_NORM * MIN_NORM     # norm-based guard (no extra reduce)
    mv = jnp.where(zero_row, 0.0, mx * (mv_norm * inv_mx_norm))
    mv_sq = jnp.where(zero_row, 0.0, mv_norm * mv_norm)

    # hyperbolic bias add: mobius_add(mv, hyp_bias); hyp_bias precomputed host-side.
    hb = hb_ref[...]
    b_sq = jnp.sum(hb * hb, axis=-1, keepdims=True)          # (1,1) reduce - negligible
    xy = jnp.sum(mv * hb, axis=-1, keepdims=True)
    coef = 1.0 + 2.0 * C * xy
    num = (coef + C * b_sq) * mv + (1.0 - C * mv_sq) * hb
    denom = jnp.maximum(coef + C * C * mv_sq * b_sq, MIN_NORM)
    res = num * pl.reciprocal(denom, approx=True)

    # proj(res) fused with HypAgg's logmap0.
    _, res_norm, inv_res_norm = _sq_norm_inv(res)
    clamped = jnp.minimum(res_norm, MAXNORM)
    xt = res * (_artanh(SQRT_C * clamped) * (1.0 / SQRT_C) * inv_res_norm)
    out_ref[...] = xt.astype(out_ref.dtype)


# ----------------------------------------------------------------------------
# Kernel B: HypAgg aggregation (block-diagonal adj @ xt, tiled with f32
#           accumulator) + HypAct epilogue.  Optionally appends the module's
#           final logmap0(proj(.)) for the last layer.
# ----------------------------------------------------------------------------
def hyp_agg_act_kernel(adj_ref, xt_ref, out_ref, acc_ref, *, final_logmap):
    k = pl.program_id(2)

    @pl.when(k == 0)
    def _():
        acc_ref[...] = jnp.zeros_like(acc_ref)

    acc_ref[...] += jnp.dot(adj_ref[0], xt_ref[...],
                            preferred_element_type=jnp.float32)

    @pl.when(k == pl.num_programs(2) - 1)
    def _():
        support = acc_ref[...]
        # HypAgg epilogue: h = proj(expmap0(support))
        _, s_norm, inv_s_norm = _sq_norm_inv(support)
        h_norm = jnp.maximum(
            jnp.minimum(jnp.tanh(SQRT_C * s_norm) * (1.0 / SQRT_C), MAXNORM), MIN_NORM)
        h = support * (h_norm * inv_s_norm)
        # HypAct: tanh in tangent space, map back with proj(expmap0(.))
        ht = jnp.tanh(h * (_artanh(SQRT_C * h_norm)
                           * pl.reciprocal(SQRT_C * h_norm, approx=True)))
        _, ht_norm, inv_ht_norm = _sq_norm_inv(ht)
        o_norm = jnp.maximum(
            jnp.minimum(jnp.tanh(SQRT_C * ht_norm) * (1.0 / SQRT_C), MAXNORM), MIN_NORM)
        out = ht * (o_norm * inv_ht_norm)
        if final_logmap:
            # module epilogue: h = logmap0(proj(h2)) -- h2 is already inside the ball.
            out = out * (_artanh(SQRT_C * o_norm)
                         * pl.reciprocal(SQRT_C * o_norm, approx=True))
        out_ref[...] = out.astype(out_ref.dtype)


# ----------------------------------------------------------------------------
# Kernel C: per-subgraph mean pooling (count-normalized mask @ h) + expmap0+proj
# ----------------------------------------------------------------------------
def pool_expmap_kernel(mask_ref, h_ref, out_ref):
    pooled = jnp.dot(mask_ref[0], h_ref[...], preferred_element_type=jnp.float32)
    _, p_norm, inv_p_norm = _sq_norm_inv(pooled)
    o_norm = jnp.minimum(jnp.tanh(SQRT_C * p_norm) * (1.0 / SQRT_C), MAXNORM)
    out_ref[0] = pooled * (o_norm * inv_p_norm)


# ----------------------------------------------------------------------------
# pallas_call wrappers
# ----------------------------------------------------------------------------
def _hyp_linear_tangent(x, w, hb, *, tm, lift_input):
    n, din_p = x.shape
    hid_p = w.shape[1]
    kernel = functools.partial(hyp_linear_tangent_kernel, lift_input=lift_input)
    return pl.pallas_call(
        kernel,
        out_shape=jax.ShapeDtypeStruct((n, hid_p), jnp.bfloat16),
        grid=(n // tm,),
        in_specs=[
            pl.BlockSpec((tm, din_p), lambda i: (i, 0)),
            pl.BlockSpec((din_p, hid_p), lambda i: (0, 0)),
            pl.BlockSpec((1, hid_p), lambda i: (0, 0)),
        ],
        out_specs=pl.BlockSpec((tm, hid_p), lambda i: (i, 0)),
        compiler_params=pltpu.CompilerParams(
            dimension_semantics=("parallel",),
            vmem_limit_bytes=VMEM_LIMIT),
    )(x, w, hb)


def _hyp_agg_act(adj_blocks, xt, *, tm, tk, final_logmap):
    b, np_p, _ = adj_blocks.shape
    n, hid_p = xt.shape
    mblk = np_p // tm
    kblk = np_p // tk
    kernel = functools.partial(hyp_agg_act_kernel, final_logmap=final_logmap)
    return pl.pallas_call(
        kernel,
        out_shape=jax.ShapeDtypeStruct((n, hid_p), jnp.float32),
        grid=(b, mblk, kblk),
        in_specs=[
            pl.BlockSpec((1, tm, tk), lambda g, i, k: (g, i, k)),
            pl.BlockSpec((tk, hid_p), lambda g, i, k: (g * kblk + k, 0)),
        ],
        out_specs=pl.BlockSpec((tm, hid_p), lambda g, i, k: (g * mblk + i, 0)),
        scratch_shapes=[pltpu.VMEM((tm, hid_p), jnp.float32)],
        compiler_params=pltpu.CompilerParams(
            dimension_semantics=("parallel", "parallel", "arbitrary"),
            vmem_limit_bytes=VMEM_LIMIT),
    )(adj_blocks, xt)


def _pool_expmap(norm_mask, h_tan):
    b, maxc_p, np_p = norm_mask.shape
    hid_p = h_tan.shape[1]
    return pl.pallas_call(
        pool_expmap_kernel,
        out_shape=jax.ShapeDtypeStruct((b, maxc_p, hid_p), jnp.float32),
        grid=(b,),
        in_specs=[
            pl.BlockSpec((1, maxc_p, np_p), lambda g: (g, 0, 0)),
            pl.BlockSpec((np_p, hid_p), lambda g: (g, 0)),
        ],
        out_specs=pl.BlockSpec((1, maxc_p, hid_p), lambda g: (g, 0, 0)),
        compiler_params=pltpu.CompilerParams(
            dimension_semantics=("parallel",),
            vmem_limit_bytes=VMEM_LIMIT),
    )(norm_mask, h_tan)


# ----------------------------------------------------------------------------
# Host-side helpers (tiny constants, hoisted out of the tiled grids)
# ----------------------------------------------------------------------------
def _host_proj_expmap0(u, c):
    sqrt_c = math.sqrt(c)
    norm = jnp.maximum(jnp.linalg.norm(u, axis=-1, keepdims=True), MIN_NORM)
    e = jnp.tanh(sqrt_c * norm) * u / (sqrt_c * norm)
    en = jnp.maximum(jnp.linalg.norm(e, axis=-1, keepdims=True), MIN_NORM)
    maxn = (1.0 - PROJ_EPS) / sqrt_c
    return jnp.where(en > maxn, e / en * maxn, e)


# ----------------------------------------------------------------------------
# Full forward pass (content_module=True branch)
# ----------------------------------------------------------------------------
def hyp_com_enc(h, adj_blocks, w1, b1, w2, b2, mask, max_comments):
    """
    h:          [B, n_per, in_dim]     Euclidean node features per graph
    adj_blocks: [B, n_per, n_per]      dense per-graph adjacency (block-diagonal batch)
    w1,b1,w2,b2: HGCNLayer weights/biases
    mask:       [B, max_comments, n_per]  0/1 subgraph membership
    returns     [B, max_comments, hidden_dim]
    """
    B, n_per, din = h.shape
    hid = w1.shape[1]

    din_p = _round_up(din, 128)
    hid_p = _round_up(hid, 128)
    np_p = _round_up(n_per, 128)
    maxc_p = _round_up(max_comments, 8)

    tm = 256 if np_p % 256 == 0 else 128
    tk = 512 if np_p % 512 == 0 else (256 if np_p % 256 == 0 else 128)

    f32 = jnp.float32
    h_p = jnp.pad(h.astype(f32), ((0, 0), (0, np_p - n_per), (0, din_p - din)))
    h_p = h_p.reshape(B * np_p, din_p)
    adj_p = jnp.pad(adj_blocks.astype(f32),
                    ((0, 0), (0, np_p - n_per), (0, np_p - n_per))).astype(jnp.bfloat16)
    w1_p = jnp.pad(w1.astype(f32), ((0, din_p - din), (0, hid_p - hid)))
    w2_p = jnp.pad(w2.astype(f32), ((0, hid_p - hid), (0, hid_p - hid)))
    b1_p = jnp.pad(b1.astype(f32).reshape(1, -1), ((0, 0), (0, hid_p - hid)))
    b2_p = jnp.pad(b2.astype(f32).reshape(1, -1), ((0, 0), (0, hid_p - hid)))

    # hyperbolic bias = proj(expmap0(proj_tan0(b))) -- hoisted out of the kernels
    hb1 = _host_proj_expmap0(b1_p, C)
    hb2 = _host_proj_expmap0(b2_p, C)

    # fold the subgraph node counts into the pooling mask
    counts = jnp.sum(mask.astype(f32), axis=-1, keepdims=True)
    norm_mask = mask.astype(f32) / jnp.maximum(counts, 1.0)
    norm_mask = jnp.pad(norm_mask,
                        ((0, 0), (0, maxc_p - max_comments), (0, np_p - n_per)))

    # conv1
    xt1 = _hyp_linear_tangent(h_p, w1_p, hb1, tm=tm, lift_input=True)
    h1 = _hyp_agg_act(adj_p, xt1, tm=tm, tk=tk, final_logmap=False)
    # conv2 (+ final logmap0(proj(.)) of the module)
    xt2 = _hyp_linear_tangent(h1, w2_p, hb2, tm=tm, lift_input=False)
    h_tan = _hyp_agg_act(adj_p, xt2, tm=tm, tk=tk, final_logmap=True)
    # content_module: per-subgraph mean pooling + expmap0 + proj
    ret = _pool_expmap(norm_mask, h_tan)
    return ret[:, :max_comments, :hid]


# ----------------------------------------------------------------------------
# Demo / smoke test
# ----------------------------------------------------------------------------
if __name__ == "__main__":
    key = jax.random.PRNGKey(0)
    B, N_PER, DIN, HID, MAXC = 2, 8, 16, 32, 4

    k1, k2, k3, k4, k5, k6 = jax.random.split(key, 6)

    # Euclidean node features, per graph
    h = jax.random.normal(k1, (B, N_PER, DIN), jnp.float32) * 0.1
    # per-graph dense adjacency blocks (batched DGL graph is block-diagonal)
    adj_blocks = (jax.random.uniform(k2, (B, N_PER, N_PER)) < 0.4).astype(jnp.float32)

    # HGCNLayer weights (conv1: in_dim->hidden, conv2: hidden->hidden) + biases
    w1 = jax.random.normal(k3, (DIN, HID), jnp.float32) / math.sqrt(DIN)
    b1 = jax.random.normal(k4, (1, HID), jnp.float32) * 0.01
    w2 = jax.random.normal(k5, (HID, HID), jnp.float32) / math.sqrt(HID)
    b2 = jax.random.normal(k6, (1, HID), jnp.float32) * 0.01

    # subgraphs: per-batch list of (local) node lists -> 0/1 membership mask
    subgraphs = [
        [[0, 1, 2], [3, 4], [5, 6, 7], [0, 7]],   # batch 0: 4 comments (== MAXC)
        [[0, 1], [2, 3, 4, 5], [6, 7]],           # batch 1: 3 comments (padded to MAXC)
    ]
    mask = jnp.zeros((B, MAXC, N_PER), jnp.float32)
    for b in range(B):
        for s, node_list in enumerate(subgraphs[b][:MAXC]):
            for n in node_list:
                mask = mask.at[b, s, n].set(1.0)

    out = hyp_com_enc(h, adj_blocks, w1, b1, w2, b2, mask, MAXC)
    out = jax.block_until_ready(out)
    assert out.shape == (B, MAXC, HID)
    assert bool(jnp.all(jnp.isfinite(out)))
    print("KERNEL_OK")
</pallas_src>

<mosaic_0001>
module attributes {stable_mosaic.version = 11 : i64} {
  func.func @hyp_linear_tangent_kernel(%arg0: i32, %arg1: memref<128x128xf32, #tpu.memory_space<vmem>>, %arg2: memref<128x128xf32, #tpu.memory_space<vmem>>, %arg3: memref<1x128xf32, #tpu.memory_space<vmem>>, %arg4: memref<128x128xbf16, #tpu.memory_space<vmem>>) attributes {dimension_semantics = [#tpu.dimension_semantics<parallel>], iteration_bounds = array<i64: 2>, scalar_prefetch = 0 : i64, scratch_operands = 0 : i64, tpu.core_type = #tpu.core_type<tc>, window_params = [{transform_indices = @transform_0, window_bounds = array<i64: 128, 128>}, {pipeline_mode = #tpu.pipeline_mode<synchronous>, transform_indices = @transform_1, window_bounds = array<i64: 128, 128>}, {pipeline_mode = #tpu.pipeline_mode<synchronous>, transform_indices = @transform_2, window_bounds = array<i64: 1, 128>}, {transform_indices = @transform_3, window_bounds = array<i64: 128, 128>}]} {
    %c0 = arith.constant 0 : index
    %c0_0 = arith.constant 0 : index
    %0 = vector.load %arg1[%c0, %c0_0] : memref<128x128xf32, #tpu.memory_space<vmem>>, vector<128x128xf32>
    %1 = arith.mulf %0, %0 : vector<128x128xf32>
    %cst = arith.constant dense<0.000000e+00> : vector<128xf32>
    %2 = vector.multi_reduction <add>, %1, %cst [1] : vector<128x128xf32> to vector<128xf32>
    %3 = vector.shape_cast %2 : vector<128xf32> to vector<128x1xf32>
    %cst_1 = arith.constant 1.000000e-30 : f32
    %4 = vector.broadcast %cst_1 : f32 to vector<128x1xf32>
    %5 = arith.maximumf %3, %4 : vector<128x1xf32>
    %6 = math.rsqrt %5 : vector<128x1xf32>
    %7 = arith.mulf %5, %6 : vector<128x1xf32>
    %cst_2 = arith.constant 1.000000e+00 : f32
    %8 = vector.broadcast %cst_2 : f32 to vector<128x1xf32>
    %9 = arith.mulf %8, %7 : vector<128x1xf32>
    %10 = math.tanh %9 : vector<128x1xf32>
    %cst_3 = arith.constant 1.000000e+00 : f32
    %11 = vector.broadcast %cst_3 : f32 to vector<128x1xf32>
    %12 = arith.mulf %10, %11 : vector<128x1xf32>
    %cst_4 = arith.constant 0.995999991 : f32
    %13 = vector.broadcast %cst_4 : f32 to vector<128x1xf32>
    %14 = arith.minimumf %12, %13 : vector<128x1xf32>
    %cst_5 = arith.constant 1.000000e-15 : f32
    %15 = vector.broadcast %cst_5 : f32 to vector<128x1xf32>
    %16 = arith.maximumf %14, %15 : vector<128x1xf32>
    %17 = arith.mulf %16, %6 : vector<128x1xf32>
    %18 = vector.broadcast %17 : vector<128x1xf32> to vector<128x128xf32>
    %19 = arith.mulf %0, %18 : vector<128x128xf32>
    %20 = tpu.reciprocal %16 {approx = true} : vector<128x1xf32> -> vector<128x1xf32>
    %c0_6 = arith.constant 0 : index
    %c0_7 = arith.constant 0 : index
    %21 = vector.load %arg2[%c0_6, %c0_7] : memref<128x128xf32, #tpu.memory_space<vmem>>, vector<128x128xf32>
    %cst_8 = arith.constant dense<0.000000e+00> : vector<128x128xf32>
    %22 = tpu.matmul %19, %21, %cst_8 {dimension_numbers = #tpu.dot_dimension_numbers<[1], [0], [0], [1], [0, 0, 1, 1], [], []>} : vector<128x128xf32>, vector<128x128xf32>, vector<128x128xf32> -> vector<128x128xf32>
    %23 = arith.mulf %22, %22 : vector<128x128xf32>
    %cst_9 = arith.constant dense<0.000000e+00> : vector<128xf32>
    %24 = vector.multi_reduction <add>, %23, %cst_9 [1] : vector<128x128xf32> to vector<128xf32>
    %25 = vector.shape_cast %24 : vector<128xf32> to vector<128x1xf32>
    %cst_10 = arith.constant 1.000000e-30 : f32
    %26 = vector.broadcast %cst_10 : f32 to vector<128x1xf32>
    %27 = arith.maximumf %25, %26 : vector<128x1xf32>
    %28 = math.rsqrt %27 : vector<128x1xf32>
    %29 = arith.mulf %27, %28 : vector<128x1xf32>
    %30 = arith.mulf %29, %20 : vector<128x1xf32>
    %cst_11 = arith.constant 1.000000e+00 : f32
    %31 = vector.broadcast %cst_11 : f32 to vector<128x1xf32>
    %32 = arith.mulf %31, %16 : vector<128x1xf32>
    %cst_12 = arith.constant -0.99999988 : f32
    %cst_13 = arith.constant 0.99999988 : f32
    %33 = vector.broadcast %cst_12 : f32 to vector<128x1xf32>
    %34 = arith.maximumf %33, %32 : vector<128x1xf32>
    %35 = vector.broadcast %cst_13 : f32 to vector<128x1xf32>
    %36 = arith.minimumf %35, %34 : vector<128x1xf32>
    %cst_14 = arith.constant 1.000000e+00 : f32
    %37 = vector.broadcast %cst_14 : f32 to vector<128x1xf32>
    %38 = arith.addf %37, %36 : vector<128x1xf32>
    %cst_15 = arith.constant 1.000000e+00 : f32
    %39 = vector.broadcast %cst_15 : f32 to vector<128x1xf32>
    %40 = arith.subf %39, %36 : vector<128x1xf32>
    %41 = arith.divf %38, %40 : vector<128x1xf32>
    %42 = math.log %41 : vector<128x1xf32>
    %cst_16 = arith.constant 5.000000e-01 : f32
    %43 = vector.broadcast %cst_16 : f32 to vector<128x1xf32>
    %44 = arith.mulf %43, %42 : vector<128x1xf32>
    %45 = arith.mulf %30, %44 : vector<128x1xf32>
    %46 = math.tanh %45 : vector<128x1xf32>
    %cst_17 = arith.constant 1.000000e+00 : f32
    %47 = vector.broadcast %cst_17 : f32 to vector<128x1xf32>
    %48 = arith.mulf %46, %47 : vector<128x1xf32>
    %cst_18 = arith.constant 0.995999991 : f32
    %49 = vector.broadcast %cst_18 : f32 to vector<128x1xf32>
    %50 = arith.minimumf %48, %49 : vector<128x1xf32>
    %cst_19 = arith.constant 1.000000e-30 : f32
    %51 = vector.broadcast %cst_19 : f32 to vector<128x1xf32>
    %52 = arith.cmpf ole, %25, %51 : vector<128x1xf32>
    %53 = arith.mulf %50, %28 : vector<128x1xf32>
    %54 = vector.broadcast %53 : vector<128x1xf32> to vector<128x128xf32>
    %55 = arith.mulf %22, %54 : vector<128x128xf32>
    %cst_20 = arith.constant 0.000000e+00 : f32
    %56 = vector.shape_cast %52 : vector<128x1xi1> to vector<128x1xi1>
    %57 = vector.broadcast %56 : vector<128x1xi1> to vector<128x128xi1>
    %58 = vector.broadcast %cst_20 : f32 to vector<128x128xf32>
    %59 = arith.select %57, %58, %55 : vector<128x128xi1>, vector<128x128xf32>
    %60 = arith.mulf %50, %50 : vector<128x1xf32>
    %cst_21 = arith.constant 0.000000e+00 : f32
    %61 = vector.broadcast %cst_21 : f32 to vector<128x1xf32>
    %62 = arith.select %52, %61, %60 : vector<128x1xi1>, vector<128x1xf32>
    %c0_22 = arith.constant 0 : index
    %c0_23 = arith.constant 0 : index
    %63 = vector.load %arg3[%c0_22, %c0_23] : memref<1x128xf32, #tpu.memory_space<vmem>>, vector<1x128xf32>
    %64 = arith.mulf %63, %63 : vector<1x128xf32>
    %cst_24 = arith.constant dense<0.000000e+00> : vector<1xf32>
    %65 = vector.multi_reduction <add>, %64, %cst_24 [1] : vector<1x128xf32> to vector<1xf32>
    %66 = vector.shape_cast %65 : vector<1xf32> to vector<1x1xf32>
    %67 = vector.broadcast %63 : vector<1x128xf32> to vector<128x128xf32>
    %68 = arith.mulf %59, %67 : vector<128x128xf32>
    %cst_25 = arith.constant dense<0.000000e+00> : vector<128xf32>
    %69 = vector.multi_reduction <add>, %68, %cst_25 [1] : vector<128x128xf32> to vector<128xf32>
    %70 = vector.shape_cast %69 : vector<128xf32> to vector<128x1xf32>
    %cst_26 = arith.constant 2.000000e+00 : f32
    %71 = vector.broadcast %cst_26 : f32 to vector<128x1xf32>
    %72 = arith.mulf %71, %70 : vector<128x1xf32>
    %cst_27 = arith.constant 1.000000e+00 : f32
    %73 = vector.broadcast %cst_27 : f32 to vector<128x1xf32>
    %74 = arith.addf %73, %72 : vector<128x1xf32>
    %cst_28 = arith.constant 1.000000e+00 : f32
    %75 = vector.broadcast %cst_28 : f32 to vector<1x1xf32>
    %76 = arith.mulf %75, %66 : vector<1x1xf32>
    %77 = vector.broadcast %76 : vector<1x1xf32> to vector<128x1xf32>
    %78 = arith.addf %74, %77 : vector<128x1xf32>
    %79 = vector.broadcast %78 : vector<128x1xf32> to vector<128x128xf32>
    %80 = arith.mulf %79, %59 : vector<128x128xf32>
    %cst_29 = arith.constant 1.000000e+00 : f32
    %81 = vector.broadcast %cst_29 : f32 to vector<128x1xf32>
    %82 = arith.mulf %81, %62 : vector<128x1xf32>
    %cst_30 = arith.constant 1.000000e+00 : f32
    %83 = vector.broadcast %cst_30 : f32 to vector<128x1xf32>
    %84 = arith.subf %83, %82 : vector<128x1xf32>
    %85 = vector.broadcast %84 : vector<128x1xf32> to vector<128x128xf32>
    %86 = vector.broadcast %63 : vector<1x128xf32> to vector<128x128xf32>
    %87 = arith.mulf %85, %86 : vector<128x128xf32>
    %88 = arith.addf %80, %87 : vector<128x128xf32>
    %cst_31 = arith.constant 1.000000e+00 : f32
    %89 = vector.broadcast %cst_31 : f32 to vector<128x1xf32>
    %90 = arith.mulf %89, %62 : vector<128x1xf32>
    %91 = vector.broadcast %66 : vector<1x1xf32> to vector<128x1xf32>
    %92 = arith.mulf %90, %91 : vector<128x1xf32>
    %93 = arith.addf %74, %92 : vector<128x1xf32>
    %cst_32 = arith.constant 1.000000e-15 : f32
    %94 = vector.broadcast %cst_32 : f32 to vector<128x1xf32>
    %95 = arith.maximumf %93, %94 : vector<128x1xf32>
    %96 = tpu.reciprocal %95 {approx = true} : vector<128x1xf32> -> vector<128x1xf32>
    %97 = vector.broadcast %96 : vector<128x1xf32> to vector<128x128xf32>
    %98 = arith.mulf %88, %97 : vector<128x128xf32>
    %99 = arith.mulf %98, %98 : vector<128x128xf32>
    %cst_33 = arith.constant dense<0.000000e+00> : vector<128xf32>
    %100 = vector.multi_reduction <add>, %99, %cst_33 [1] : vector<128x128xf32> to vector<128xf32>
    %101 = vector.shape_cast %100 : vector<128xf32> to vector<128x1xf32>
    %cst_34 = arith.constant 1.000000e-30 : f32
    %102 = vector.broadcast %cst_34 : f32 to vector<128x1xf32>
    %103 = arith.maximumf %101, %102 : vector<128x1xf32>
    %104 = math.rsqrt %103 : vector<128x1xf32>
    %105 = arith.mulf %103, %104 : vector<128x1xf32>
    %cst_35 = arith.constant 0.995999991 : f32
    %106 = vector.broadcast %cst_35 : f32 to vector<128x1xf32>
    %107 = arith.minimumf %105, %106 : vector<128x1xf32>
    %cst_36 = arith.constant 1.000000e+00 : f32
    %108 = vector.broadcast %cst_36 : f32 to vector<128x1xf32>
    %109 = arith.mulf %108, %107 : vector<128x1xf32>
    %cst_37 = arith.constant -0.99999988 : f32
    %cst_38 = arith.constant 0.99999988 : f32
    %110 = vector.broadcast %cst_37 : f32 to vector<128x1xf32>
    %111 = arith.maximumf %110, %109 : vector<128x1xf32>
    %112 = vector.broadcast %cst_38 : f32 to vector<128x1xf32>
    %113 = arith.minimumf %112, %111 : vector<128x1xf32>
    %cst_39 = arith.constant 1.000000e+00 : f32
    %114 = vector.broadcast %cst_39 : f32 to vector<128x1xf32>
    %115 = arith.addf %114, %113 : vector<128x1xf32>
    %cst_40 = arith.constant 1.000000e+00 : f32
    %116 = vector.broadcast %cst_40 : f32 to vector<128x1xf32>
    %117 = arith.subf %116, %113 : vector<128x1xf32>
    %118 = arith.divf %115, %117 : vector<128x1xf32>
    %119 = math.log %118 : vector<128x1xf32>
    %cst_41 = arith.constant 5.000000e-01 : f32
    %120 = vector.broadcast %cst_41 : f32 to vector<128x1xf32>
    %121 = arith.mulf %120, %119 : vector<128x1xf32>
    %cst_42 = arith.constant 1.000000e+00 : f32
    %122 = vector.broadcast %cst_42 : f32 to vector<128x1xf32>
    %123 = arith.mulf %121, %122 : vector<128x1xf32>
    %124 = arith.mulf %123, %104 : vector<128x1xf32>
    %125 = vector.broadcast %124 : vector<128x1xf32> to vector<128x128xf32>
    %126 = arith.mulf %98, %125 : vector<128x128xf32>
    %127 = arith.truncf %126 : vector<128x128xf32> to vector<128x128xbf16>
    %c0_43 = arith.constant 0 : index
    %c0_44 = arith.constant 0 : index
    %128 = vector.load %arg4[%c0_43, %c0_44] : memref<128x128xbf16, #tpu.memory_space<vmem>>, vector<128x128xbf16>
    tpu.vector_store %arg4[%c0_43, %c0_44], %127 {strides = array<i32>} : memref<128x128xbf16, #tpu.memory_space<vmem>>, vector<128x128xbf16>,
    return
  }
  func.func @transform_0(%arg0: i32) -> (i32, i32) {
    %c0_i32 = arith.constant 0 : i32
    %c0_i32_0 = arith.constant 0 : i32
    return %arg0, %c0_i32 : i32, i32
  }
  func.func @transform_1(%arg0: i32) -> (i32, i32) {
    %c0_i32 = arith.constant 0 : i32
    %c0_i32_0 = arith.constant 0 : i32
    %c0_i32_1 = arith.constant 0 : i32
    return %c0_i32, %c0_i32_0 : i32, i32
  }
  func.func @transform_2(%arg0: i32) -> (i32, i32) {
    %c0_i32 = arith.constant 0 : i32
    %c0_i32_0 = arith.constant 0 : i32
    %c0_i32_1 = arith.constant 0 : i32
    return %c0_i32, %c0_i32_0 : i32, i32
  }
  func.func @transform_3(%arg0: i32) -> (i32, i32) {
    %c0_i32 = arith.constant 0 : i32
    %c0_i32_0 = arith.constant 0 : i32
    return %arg0, %c0_i32 : i32, i32
  }
}

</mosaic_0001>

<llo_original>
// kernel: tpu_custom_call.1
$region0: #{tpu_custom_call.1}
  #allocation0 [shape = 'u32[]', space=smem, size = 0x4, offset = 0x4, fixed_abs, tag = 'smem constant byte address 0x4 - core index']
  #allocation1 [shape = 'u32[144,128]{1,0:T(1,128)}', space=vmem, size = 0x12000, scoped, tag = 'internal scratch']
  %s0 = inlined_call_operand.hbm [shape: f32[256,128], index: 0, kind: input, shape index: {}]
  %s1 = inlined_call_operand.hbm [shape: f32[128,128], index: 1, kind: input, shape index: {}]
  %s2 = inlined_call_operand.vmem [shape: f32[1,128], index: 2, kind: input, shape index: {}]
  %s3 = inlined_call_operand.hbm [shape: bf16[256,128], index: 3, kind: output, shape index: {}]
  %s4 = sld [smem:[#allocation0]]
  $region53: #{tpu_custom_call.1} parent=0
    _
  %s6 = ssub.s32 1, %s4
  %s7 = scalar_select 0, %s6, %s4
  $region1: #{tpu_custom_call.1} parent=0
    #allocation2 [shape = 'u8[131072]{0}', space=vmem, size = 0x20000, scoped, tag = 'input window, operand 0']
    #allocation3 [shape = 's32[2]{0}', space=sflag, size = 0x8, scoped, tag = 'scoped memory for tpu_custom_call.1']
    #allocation4 [shape = 's32[2]{0}', space=sflag, size = 0x8, scoped, tag = 'scoped memory for tpu_custom_call.1']
    #allocation5 [shape = 'u8[65536]{0}', space=vmem, size = 0x10000, scoped, tag = 'input window, operand 1, single buffered']
    #allocation6 [shape = 's32[1]{0}', space=sflag, size = 0x4, scoped, tag = 'scoped memory for tpu_custom_call.1']
    #allocation7 [shape = 'u8[65536]{0}', space=vmem, size = 0x10000, scoped, tag = 'output window, operand 0']
    %8 = vsyncpa [#allocation3], 0
    %s9 = scalar_lea.sflag [#allocation3], 1
    %10 = vsyncpa %s9, 0
    %11 = vsyncpa [#allocation6], 0
    %12 = vsyncpa [#allocation4], 0
    %s13 = scalar_lea.sflag [#allocation4], 1
    %14 = vsyncpa %s13, 0
    loop: start=0, step=1, limit=4
    $region2: #{tpu_custom_call.1} parent=1 // loop_pre_header
      _
    $region3: #{tpu_custom_call.1} parent=1 // loop_header
      %s16 = sphi 0, %s20
      %p17 = scmp.ge.s32.totalorder %s16, 4
      %s26 = sphi 0, %s28
      %s29 = sphi 0, %s26
      %s30 = sphi 0, %s29
      %s46 = sphi 0, %s30
      %s50 = sphi 0, %s50
      %s52 = sphi 0, %s50
      %s53 = sphi 0, %s52
      %s67 = sphi 0, %s53
      %s71 = sphi 0, %s71
      %s73 = sphi 0, %s71
      %s74 = sphi 0, %s73
      %s88 = sphi 0, %s74
      %s94 = sphi 0, %s96
      %s97 = sphi 0, %s94
      %s98 = sphi 0, %s97
      %s114 = sphi 0, %s98
    $region4: #{tpu_custom_call.1} parent=1 // loop_header_branch
      %19 = sbr.rel (%p17) target = $region8
    $region5: #{tpu_custom_call.1} parent=1 // loop_body
      %s21 = ssub.s32 %s16, 1
      %s22 = ssub.s32 %s16, 2
      %s23 = sadd.s32 %s16, 1
      %s24 = ssub.s32 %s16, %s23
      %p25 = scmp.eq.s32.totalorder %s24, 0
      %s27 = sadd.s32 %s26, 1
      %s28 = scalar_select %p25, %s26, %s27
      %p31 = pneg %p25
      %p32 = scmp.eq.s32.totalorder %s16, 1
      %p33 = por %p31, %p32
      %p34 = scmp.ne.s32.totalorder %s26, %s29
      %p35 = scmp.eq.s32.totalorder %s16, 0
      %p36 = por %p34, %p35
      %p37 = scmp.ne.s32.totalorder %s26, %s29
      %p38 = scmp.eq.s32.totalorder %s21, 1
      %p39 = por %p37, %p38
      %p40 = scmp.ne.s32.totalorder %s29, %s30
      %p41 = scmp.eq.s32.totalorder %s21, 0
      %p42 = por %p40, %p41
      %p43 = scmp.ne.s32.totalorder %s29, %s30
      %p44 = scmp.eq.s32.totalorder %s22, 1
      %p45 = por %p43, %p44
      %p47 = scmp.ne.s32.totalorder %s30, %s46
      %p48 = scmp.eq.s32.totalorder %s22, 0
      %p49 = por %p47, %p48
      %s51 = sadd.s32 %s50, 1
      %p54 = scmp.eq.s32.totalorder %s16, 1
      %p55 = scmp.ne.s32.totalorder %s50, %s52
      %p56 = scmp.eq.s32.totalorder %s16, 0
      %p57 = por %p55, %p56
      %p58 = scmp.ne.s32.totalorder %s50, %s52
      %p59 = scmp.eq.s32.totalorder %s21, 1
      %p60 = por %p58, %p59
      %p61 = scmp.ne.s32.totalorder %s52, %s53
      %p62 = scmp.eq.s32.totalorder %s21, 0
      %p63 = por %p61, %p62
      %p64 = scmp.ne.s32.totalorder %s52, %s53
      %p65 = scmp.eq.s32.totalorder %s22, 1
      %p66 = por %p64, %p65
      %p68 = scmp.ne.s32.totalorder %s53, %s67
      %p69 = scmp.eq.s32.totalorder %s22, 0
      %p70 = por %p68, %p69
      %s72 = sadd.s32 %s71, 1
      %p75 = scmp.eq.s32.totalorder %s16, 1
      %p76 = scmp.ne.s32.totalorder %s71, %s73
      %p77 = scmp.eq.s32.totalorder %s16, 0
      %p78 = por %p76, %p77
      %p79 = scmp.ne.s32.totalorder %s71, %s73
      %p80 = scmp.eq.s32.totalorder %s21, 1
      %p81 = por %p79, %p80
      %p82 = scmp.ne.s32.totalorder %s73, %s74
      %p83 = scmp.eq.s32.totalorder %s21, 0
      %p84 = por %p82, %p83
      %p85 = scmp.ne.s32.totalorder %s73, %s74
      %p86 = scmp.eq.s32.totalorder %s22, 1
      %p87 = por %p85, %p86
      %p89 = scmp.ne.s32.totalorder %s74, %s88
      %p90 = scmp.eq.s32.totalorder %s22, 0
      %p91 = por %p89, %p90
      %s92 = ssub.s32 %s16, %s23
      %p93 = scmp.eq.s32.totalorder %s92, 0
      %s95 = sadd.s32 %s94, 1
      %s96 = scalar_select %p93, %s94, %s95
      %p99 = pneg %p93
      %p100 = scmp.eq.s32.totalorder %s16, 1
      %p101 = por %p99, %p100
      %p102 = scmp.ne.s32.totalorder %s94, %s97
      %p103 = scmp.eq.s32.totalorder %s16, 0
      %p104 = por %p102, %p103
      %p105 = scmp.ne.s32.totalorder %s94, %s97
      %p106 = scmp.eq.s32.totalorder %s21, 1
      %p107 = por %p105, %p106
      %p108 = scmp.ne.s32.totalorder %s97, %s98
      %p109 = scmp.eq.s32.totalorder %s21, 0
      %p110 = por %p108, %p109
      %p111 = scmp.ne.s32.totalorder %s97, %s98
      %p112 = scmp.eq.s32.totalorder %s22, 1
      %p113 = por %p111, %p112
      %p115 = scmp.ne.s32.totalorder %s98, %s114
      %p116 = scmp.eq.s32.totalorder %s22, 0
      %p117 = por %p115, %p116
      %p118 = scmp.le.s32.totalorder 1, %s16
      %p119 = scmp.lt.s32.totalorder %s16, 3
      %p120 = pnand %p118, %p119
      %p121 = pneg %p120
      // Predicated region
      $region9: #{tpu_custom_call.1} parent=5 // pred_check
        _
      $region10: #{tpu_custom_call.1} parent=5 // pred_check_branch
        %123 = sbr.rel (%p120) target = $region12
      $region11: #{tpu_custom_call.1} parent=5 // pred_region
        %s124 = ssub.s32 %s16, 1
        // Predicated region
        $region13: #{tpu_custom_call.1} parent=11 // pred_check
          %p125 = pneg %p63
        $region14: #{tpu_custom_call.1} parent=11 // pred_check_branch
          %127 = sbr.rel (%p125) target = $region16
        $region15: #{tpu_custom_call.1} parent=11 // pred_region
          %s129 = ssub.s32 2048, 2048
          %130 = vsyncadd [#allocation6], %s129
          %s131 = sshll.u32 [#allocation5], 4
          %s132 = int_to_ptr.vmem [resolvable:$true] %s131
          %137 = dma.hbm_to_vmem [thread:$0]  %s1, 2048, %s132, [#allocation6], 128, 128, 8
        $region16: #{tpu_custom_call.1} parent=11 // pred_fallthru
          _
        // Predicated region
        $region17: #{tpu_custom_call.1} parent=11 // pred_check
          %p138 = pneg %p84
        $region18: #{tpu_custom_call.1} parent=11 // pred_check_branch
          %140 = sbr.rel (%p138) target = $region20
        $region19: #{tpu_custom_call.1} parent=11 // pred_region
          _
        $region20: #{tpu_custom_call.1} parent=11 // pred_fallthru
          _
      $region12: #{tpu_custom_call.1} parent=5 // pred_fallthru
        _
      %p141 = scmp.lt.s32.totalorder %s16, 2
      // Predicated region
      $region21: #{tpu_custom_call.1} parent=5 // pred_check
        %p142 = pneg %p141
      $region22: #{tpu_custom_call.1} parent=5 // pred_check_branch
        %144 = sbr.rel (%p142) target = $region24
      $region23: #{tpu_custom_call.1} parent=5 // pred_region
        // Predicated region
        $region25: #{tpu_custom_call.1} parent=23 // pred_check
          %p145 = pneg %p36
        $region26: #{tpu_custom_call.1} parent=23 // pred_check_branch
          %147 = sbr.rel (%p145) target = $region28
        $region27: #{tpu_custom_call.1} parent=23 // pred_region
          %s148 = sand.u32 %s26, 1
          %s149 = scalar_lea.sflag [#allocation3], %s148
          %s150 = sand.u32 %s26, 1
          %s151 = smul.addr %s150, 128
          %s152 = scalar_lea.vmem [#allocation2], %s151
          %s153 = smul.u32 16, %s16
          %s155 = ssub.s32 2048, 2048
          %156 = vsyncadd %s149, %s155
          %s157 = smul.addr %s153, 128
          %s158 = scalar_lea.hbm %s0, %s157
          %s159 = sshll.u32 %s152, 4
          %s160 = int_to_ptr.vmem [resolvable:$true] %s159
          %165 = dma.hbm_to_vmem [thread:$0]  %s158, 2048, %s160, %s149, 128, 128, 8
        $region28: #{tpu_custom_call.1} parent=23 // pred_fallthru
          _
      $region24: #{tpu_custom_call.1} parent=5 // pred_fallthru
        _
      %p166 = scmp.le.s32.totalorder 1, %s16
      %p167 = scmp.lt.s32.totalorder %s16, 3
      %p168 = pnand %p166, %p167
      %p169 = pneg %p168
      // Predicated region
      $region29: #{tpu_custom_call.1} parent=5 // pred_check
        _
      $region30: #{tpu_custom_call.1} parent=5 // pred_check_branch
        %171 = sbr.rel (%p168) target = $region32
      $region31: #{tpu_custom_call.1} parent=5 // pred_region
        %s172 = ssub.s32 %s16, 1
        %s173 = sand.u32 %s29, 1
        %s174 = scalar_lea.sflag [#allocation3], %s173
        %s175 = sand.u32 %s29, 1
        %s176 = smul.addr %s175, 128
        %s177 = scalar_lea.vmem [#allocation2], %s176
        // Predicated region
        $region33: #{tpu_custom_call.1} parent=31 // pred_check
          %p178 = pneg %p42
        $region34: #{tpu_custom_call.1} parent=31 // pred_check_branch
          %180 = sbr.rel (%p178) target = $region36
        $region35: #{tpu_custom_call.1} parent=31 // pred_region
          %181 = dma.done %s174, 2048
        $region36: #{tpu_custom_call.1} parent=31 // pred_fallthru
          _
        // Predicated region
        $region37: #{tpu_custom_call.1} parent=31 // pred_check
          %p182 = pneg %p63
        $region38: #{tpu_custom_call.1} parent=31 // pred_check_branch
          %184 = sbr.rel (%p182) target = $region40
        $region39: #{tpu_custom_call.1} parent=31 // pred_region
          %185 = dma.done [#allocation6], 2048
        $region40: #{tpu_custom_call.1} parent=31 // pred_fallthru
          _
        %s186 = sand.u32 %s29, 1
        %s187 = scalar_lea.sflag [#allocation3], %s186
        %s188 = sand.u32 %s29, 1
        %s189 = smul.addr %s188, 128
        %s190 = scalar_lea.vmem [#allocation2], %s189
        %p191 = pneg %p42
        %p192 = pneg %p39
        %p193 = pneg %p63
        %p194 = pneg %p60
        %p195 = pneg %p84
        %p196 = pneg %p81
        %p197 = pneg %p110
        %p198 = pneg %p107
        %s199 = sand.u32 %s97, 1
        %s200 = scalar_lea.sflag [#allocation4], %s199
        %s201 = sand.u32 %s97, 1
        %s202 = smul.addr %s201, 64
        %s203 = scalar_lea.vmem [#allocation7], %s202
        %s204 = smul.u32 16, %s21
        %s205 = smul.u32 16, %s21
        %v206 = vld [vmem:[%s177] sm:$0xff]
        %v207 = vld [vmem:[%s177 + $0x8] sm:$0xff]
        %v208 = vld [vmem:[%s177 + $0x10] sm:$0xff]
        %v209 = vld [vmem:[%s177 + $0x18] sm:$0xff]
        %v210 = vld [vmem:[%s177 + $0x20] sm:$0xff]
        %v211 = vld [vmem:[%s177 + $0x28] sm:$0xff]
        %v212 = vld [vmem:[%s177 + $0x30] sm:$0xff]
        %v213 = vld [vmem:[%s177 + $0x38] sm:$0xff]
        %v214 = vld [vmem:[%s177 + $0x40] sm:$0xff]
        %v215 = vld [vmem:[%s177 + $0x48] sm:$0xff]
        %v216 = vld [vmem:[%s177 + $0x50] sm:$0xff]
        %v217 = vld [vmem:[%s177 + $0x58] sm:$0xff]
        %v218 = vld [vmem:[%s177 + $0x60] sm:$0xff]
        %v219 = vld [vmem:[%s177 + $0x68] sm:$0xff]
        %v220 = vld [vmem:[%s177 + $0x70] sm:$0xff]
        %v221 = vld [vmem:[%s177 + $0x78] sm:$0xff]
        %v222 = vmul.f32 %v206, %v206
        %v223 = vmul.f32 %v207, %v207
        %v224 = vmul.f32 %v208, %v208
        %v225 = vmul.f32 %v209, %v209
        %v226 = vmul.f32 %v210, %v210
        %v227 = vmul.f32 %v211, %v211
        %v228 = vmul.f32 %v212, %v212
        %v229 = vmul.f32 %v213, %v213
        %v230 = vmul.f32 %v214, %v214
        %v231 = vmul.f32 %v215, %v215
        %v232 = vmul.f32 %v216, %v216
        %v233 = vmul.f32 %v217, %v217
        %v234 = vmul.f32 %v218, %v218
        %v235 = vmul.f32 %v219, %v219
        %v236 = vmul.f32 %v220, %v220
        %v237 = vmul.f32 %v221, %v221
        %238 = vadd.xlane.f32.xlu0 %v222
        %v239 = vpop.xlane.xlu0 %238
        %240 = vadd.xlane.f32.xlu0 %v223
        %v241 = vpop.xlane.xlu0 %240
        %242 = vadd.xlane.f32.xlu0 %v224
        %v243 = vpop.xlane.xlu0 %242
        %244 = vadd.xlane.f32.xlu0 %v225
        %v245 = vpop.xlane.xlu0 %244
        %246 = vadd.xlane.f32.xlu0 %v226
        %v247 = vpop.xlane.xlu0 %246
        %248 = vadd.xlane.f32.xlu0 %v227
        %v249 = vpop.xlane.xlu0 %248
        %250 = vadd.xlane.f32.xlu0 %v228
        %v251 = vpop.xlane.xlu0 %250
        %252 = vadd.xlane.f32.xlu0 %v229
        %v253 = vpop.xlane.xlu0 %252
        %254 = vadd.xlane.f32.xlu0 %v230
        %v255 = vpop.xlane.xlu0 %254
        %256 = vadd.xlane.f32.xlu0 %v231
        %v257 = vpop.xlane.xlu0 %256
        %258 = vadd.xlane.f32.xlu0 %v232
        %v259 = vpop.xlane.xlu0 %258
        %260 = vadd.xlane.f32.xlu0 %v233
        %v261 = vpop.xlane.xlu0 %260
        %262 = vadd.xlane.f32.xlu0 %v234
        %v263 = vpop.xlane.xlu0 %262
        %264 = vadd.xlane.f32.xlu0 %v235
        %v265 = vpop.xlane.xlu0 %264
        %266 = vadd.xlane.f32.xlu0 %v236
        %v267 = vpop.xlane.xlu0 %266
        %268 = vadd.xlane.f32.xlu0 %v237
        %v269 = vpop.xlane.xlu0 %268
        %v270 = vmax.f32 %v239, 1e-30
        %v271 = vmax.f32 %v241, 1e-30
        %v272 = vmax.f32 %v243, 1e-30
        %v273 = vmax.f32 %v245, 1e-30
        %v274 = vmax.f32 %v247, 1e-30
        %v275 = vmax.f32 %v249, 1e-30
        %v276 = vmax.f32 %v251, 1e-30
        %v277 = vmax.f32 %v253, 1e-30
        %v278 = vmax.f32 %v255, 1e-30
        %v279 = vmax.f32 %v257, 1e-30
        %v280 = vmax.f32 %v259, 1e-30
        %v281 = vmax.f32 %v261, 1e-30
        %v282 = vmax.f32 %v263, 1e-30
        %v283 = vmax.f32 %v265, 1e-30
        %v284 = vmax.f32 %v267, 1e-30
        %v285 = vmax.f32 %v269, 1e-30
        %v286 = vrsqrt.pop %v270
        %v287 = vrsqrt.pop %v271
        %v288 = vrsqrt.pop %v272
        %v289 = vrsqrt.pop %v273
        %v290 = vrsqrt.pop %v274
        %v291 = vrsqrt.pop %v275
        %v292 = vrsqrt.pop %v276
        %v293 = vrsqrt.pop %v277
        %v294 = vrsqrt.pop %v278
        %v295 = vrsqrt.pop %v279
        %v296 = vrsqrt.pop %v280
        %v297 = vrsqrt.pop %v281
        %v298 = vrsqrt.pop %v282
        %v299 = vrsqrt.pop %v283
        %v300 = vrsqrt.pop %v284
        %v301 = vrsqrt.pop %v285
        %v302 = vmul.f32 %v270, %v286
        %v303 = vmul.f32 %v271, %v287
        %v304 = vmul.f32 %v272, %v288
        %v305 = vmul.f32 %v273, %v289
        %v306 = vmul.f32 %v274, %v290
        %v307 = vmul.f32 %v275, %v291
        %v308 = vmul.f32 %v276, %v292
        %v309 = vmul.f32 %v277, %v293
        %v310 = vmul.f32 %v278, %v294
        %v311 = vmul.f32 %v279, %v295
        %v312 = vmul.f32 %v280, %v296
        %v313 = vmul.f32 %v281, %v297
        %v314 = vmul.f32 %v282, %v298
        %v315 = vmul.f32 %v283, %v299
        %v316 = vmul.f32 %v284, %v300
        %v317 = vmul.f32 %v285, %v301
        %v318 = vtanh.pop %v302
        %v319 = vtanh.pop %v303
        %v320 = vtanh.pop %v304
        %v321 = vtanh.pop %v305
        %v322 = vtanh.pop %v306
        %v323 = vtanh.pop %v307
        %v324 = vtanh.pop %v308
        %v325 = vtanh.pop %v309
        %v326 = vtanh.pop %v310
        %v327 = vtanh.pop %v311
        %v328 = vtanh.pop %v312
        %v329 = vtanh.pop %v313
        %v330 = vtanh.pop %v314
        %v331 = vtanh.pop %v315
        %v332 = vtanh.pop %v316
        %v333 = vtanh.pop %v317
        %v334 = vmin.f32 %v318, 0.996
        %v335 = vmin.f32 %v319, 0.996
        %v336 = vmin.f32 %v320, 0.996
        %v337 = vmin.f32 %v321, 0.996
        %v338 = vmin.f32 %v322, 0.996
        %v339 = vmin.f32 %v323, 0.996
        %v340 = vmin.f32 %v324, 0.996
        %v341 = vmin.f32 %v325, 0.996
        %v342 = vmin.f32 %v326, 0.996
        %v343 = vmin.f32 %v327, 0.996
        %v344 = vmin.f32 %v328, 0.996
        %v345 = vmin.f32 %v329, 0.996
        %v346 = vmin.f32 %v330, 0.996
        %v347 = vmin.f32 %v331, 0.996
        %v348 = vmin.f32 %v332, 0.996
        %v349 = vmin.f32 %v333, 0.996
        %v350 = vmax.f32 %v334, 1e-15
        %v351 = vmax.f32 %v335, 1e-15
        %v352 = vmax.f32 %v336, 1e-15
        %v353 = vmax.f32 %v337, 1e-15
        %v354 = vmax.f32 %v338, 1e-15
        %v355 = vmax.f32 %v339, 1e-15
        %v356 = vmax.f32 %v340, 1e-15
        %v357 = vmax.f32 %v341, 1e-15
        %v358 = vmax.f32 %v342, 1e-15
        %v359 = vmax.f32 %v343, 1e-15
        %v360 = vmax.f32 %v344, 1e-15
        %v361 = vmax.f32 %v345, 1e-15
        %v362 = vmax.f32 %v346, 1e-15
        %v363 = vmax.f32 %v347, 1e-15
        %v364 = vmax.f32 %v348, 1e-15
        %v365 = vmax.f32 %v349, 1e-15
        %v366 = vmul.f32 %v350, %v286
        %v367 = vmul.f32 %v351, %v287
        %v368 = vmul.f32 %v352, %v288
        %v369 = vmul.f32 %v353, %v289
        %v370 = vmul.f32 %v354, %v290
        %v371 = vmul.f32 %v355, %v291
        %v372 = vmul.f32 %v356, %v292
        %v373 = vmul.f32 %v357, %v293
        %v374 = vmul.f32 %v358, %v294
        %v375 = vmul.f32 %v359, %v295
        %v376 = vmul.f32 %v360, %v296
        %v377 = vmul.f32 %v361, %v297
        %v378 = vmul.f32 %v362, %v298
        %v379 = vmul.f32 %v363, %v299
        %v380 = vmul.f32 %v364, %v300
        %v381 = vmul.f32 %v365, %v301
        %v382 = vmul.f32 %v206, %v366
        %v383 = vmul.f32 %v207, %v367
        %v384 = vmul.f32 %v208, %v368
        %v385 = vmul.f32 %v209, %v369
        %v386 = vmul.f32 %v210, %v370
        %v387 = vmul.f32 %v211, %v371
        %v388 = vmul.f32 %v212, %v372
        %v389 = vmul.f32 %v213, %v373
        %v390 = vmul.f32 %v214, %v374
        %v391 = vmul.f32 %v215, %v375
        %v392 = vmul.f32 %v216, %v376
        %v393 = vmul.f32 %v217, %v377
        %v394 = vmul.f32 %v218, %v378
        %v395 = vmul.f32 %v219, %v379
        %v396 = vmul.f32 %v220, %v380
        %v397 = vmul.f32 %v221, %v381
        %v398 = vrcp.pop %v350
        %v399 = vrcp.pop %v351
        %v400 = vrcp.pop %v352
        %v401 = vrcp.pop %v353
        %v402 = vrcp.pop %v354
        %v403 = vrcp.pop %v355
        %v404 = vrcp.pop %v356
        %v405 = vrcp.pop %v357
        %v406 = vrcp.pop %v358
        %v407 = vrcp.pop %v359
        %v408 = vrcp.pop %v360
        %v409 = vrcp.pop %v361
        %v410 = vrcp.pop %v362
        %v411 = vrcp.pop %v363
        %v412 = vrcp.pop %v364
        %v413 = vrcp.pop %v365
        %v414 = vld [vmem:[#allocation5] sm:$0xff]
        %v415 = vld [vmem:[#allocation5 + $0x8] sm:$0xff]
        %v416 = vld [vmem:[#allocation5 + $0x10] sm:$0xff]
        %v417 = vld [vmem:[#allocation5 + $0x18] sm:$0xff]
        %v418 = vld [vmem:[#allocation5 + $0x20] sm:$0xff]
        %v419 = vld [vmem:[#allocation5 + $0x28] sm:$0xff]
        %v420 = vld [vmem:[#allocation5 + $0x30] sm:$0xff]
        %v421 = vld [vmem:[#allocation5 + $0x38] sm:$0xff]
        %v422 = vld [vmem:[#allocation5 + $0x40] sm:$0xff]
        %v423 = vld [vmem:[#allocation5 + $0x48] sm:$0xff]
        %v424 = vld [vmem:[#allocation5 + $0x50] sm:$0xff]
        %v425 = vld [vmem:[#allocation5 + $0x58] sm:$0xff]
        %v426 = vld [vmem:[#allocation5 + $0x60] sm:$0xff]
        %v427 = vld [vmem:[#allocation5 + $0x68] sm:$0xff]
        %v428 = vld [vmem:[#allocation5 + $0x70] sm:$0xff]
        %v429 = vld [vmem:[#allocation5 + $0x78] sm:$0xff]
        %430 = vmatprep.subr.mxu0 0.0
        %431 = vmatpush1.msra.mxu0 %v414
        %432 = vmatprep.subr.mxu0 0.0
        %433 = vmatpush1.msra.mxu0 %v415
        %434 = vmatprep.subr.mxu0 0.0
        %435 = vmatpush1.msra.mxu0 %v416
        %436 = vmatprep.subr.mxu0 0.0
        %437 = vmatpush1.msra.mxu0 %v417
        %438 = vmatprep.subr.mxu0 0.0
        %439 = vmatpush1.msra.mxu0 %v418
        %440 = vmatprep.subr.mxu0 0.0
        %441 = vmatpush1.msra.mxu0 %v419
        %442 = vmatprep.subr.mxu0 0.0
        %443 = vmatpush1.msra.mxu0 %v420
        %444 = vmatprep.subr.mxu0 0.0
        %445 = vmatpush1.msra.mxu0 %v421
        %446 = vmatprep.subr.mxu0 0.0
        %447 = vmatpush1.msra.mxu0 %v422
        %448 = vmatprep.subr.mxu0 0.0
        %449 = vmatpush1.msra.mxu0 %v423
        %450 = vmatprep.subr.mxu0 0.0
        %451 = vmatpush1.msra.mxu0 %v424
        %452 = vmatprep.subr.mxu0 0.0
        %453 = vmatpush1.msra.mxu0 %v425
        %454 = vmatprep.subr.mxu0 0.0
        %455 = vmatpush1.msra.mxu0 %v426
        %456 = vmatprep.subr.mxu0 0.0
        %457 = vmatpush1.msra.mxu0 %v427
        %458 = vmatprep.subr.mxu0 0.0
        %459 = vmatpush1.msra.mxu0 %v428
        %460 = vmatprep.subr.mxu0 0.0
        %461 = vmatpush1.msra.mxu0 %v429
        %462 = vmatprep.subr.mxu0 0.0
        %463 = vmatpush1.msra.mxu0 0.0
        %464 = vmatprep.subr.mxu0 0.0
        %465 = vmatpush1.msra.mxu0 0.0
        %466 = vmatprep.subr.mxu0 0.0
        %467 = vmatpush1.msra.mxu0 0.0
        %468 = vmatprep.subr.mxu0 0.0
        %469 = vmatpush1.msra.mxu0 0.0
        %470 = vmatprep.subr.mxu0 0.0
        %471 = vmatpush1.msra.mxu0 0.0
        %472 = vmatprep.subr.mxu0 0.0
        %473 = vmatpush1.msra.mxu0 0.0
        %474 = vmatprep.subr.mxu0 0.0
        %475 = vmatpush1.msra.mxu0 0.0
        %476 = vmatprep.subr.mxu0 0.0
        %477 = vmatpush1.msra.mxu0 0.0
        %478 = vmatprep.subr.mxu0 0.0
        %479 = vmatpush1.msra.mxu0 0.0
        %480 = vmatprep.subr.mxu0 0.0
        %481 = vmatpush1.msra.mxu0 0.0
        %482 = vmatprep.subr.mxu0 0.0
        %483 = vmatpush1.msra.mxu0 0.0
        %484 = vmatprep.subr.mxu0 0.0
        %485 = vmatpush1.msra.mxu0 0.0
        %486 = vmatprep.subr.mxu0 0.0
        %487 = vmatpush1.msra.mxu0 0.0
        %488 = vmatprep.subr.mxu0 0.0
        %489 = vmatpush1.msra.mxu0 0.0
        %490 = vmatprep.subr.mxu0 0.0
        %491 = vmatpush1.msra.mxu0 0.0
        %492 = vmatprep.subr.mxu0 0.0
        %493 = vmatpush1.msra.mxu0 0.0
        %494 = vmatprep.mubr.f32.mxu0 0.0
        %495 = vmatmul.mubr.f32.gmra.mrb[0].mxu0 %v382
        %v496 = vpop.f32.mrb[0].mxu0
        %v497 = vadd.f32 0.0, %v496
        %v498 = vpop.f32.mrb[0].mxu0
        %499 = vmatprep.mubr.f32.mxu0 0.0
        %500 = vmatmul.mubr.f32.gmra.mrb[0].mxu0 %v383
        %v501 = vpop.f32.mrb[0].mxu0
        %v502 = vadd.f32 0.0, %v501
        %v503 = vpop.f32.mrb[0].mxu0
        %504 = vmatprep.mubr.f32.mxu0 0.0
        %505 = vmatmul.mubr.f32.gmra.mrb[0].mxu0 %v384
        %v506 = vpop.f32.mrb[0].mxu0
        %v507 = vadd.f32 0.0, %v506
        %v508 = vpop.f32.mrb[0].mxu0
        %509 = vmatprep.mubr.f32.mxu0 0.0
        %510 = vmatmul.mubr.f32.gmra.mrb[0].mxu0 %v385
        %v511 = vpop.f32.mrb[0].mxu0
        %v512 = vadd.f32 0.0, %v511
        %v513 = vpop.f32.mrb[0].mxu0
        %514 = vmatprep.mubr.f32.mxu0 0.0
        %515 = vmatmul.mubr.f32.gmra.mrb[0].mxu0 %v386
        %v516 = vpop.f32.mrb[0].mxu0
        %v517 = vadd.f32 0.0, %v516
        %v518 = vpop.f32.mrb[0].mxu0
        %519 = vmatprep.mubr.f32.mxu0 0.0
        %520 = vmatmul.mubr.f32.gmra.mrb[0].mxu0 %v387
        %v521 = vpop.f32.mrb[0].mxu0
        %v522 = vadd.f32 0.0, %v521
        %v523 = vpop.f32.mrb[0].mxu0
        %524 = vmatprep.mubr.f32.mxu0 0.0
        %525 = vmatmul.mubr.f32.gmra.mrb[0].mxu0 %v388
        %v526 = vpop.f32.mrb[0].mxu0
        %v527 = vadd.f32 0.0, %v526
        %v528 = vpop.f32.mrb[0].mxu0
        %529 = vmatprep.mubr.f32.mxu0 0.0
        %530 = vmatmul.mubr.f32.gmra.mrb[0].mxu0 %v389
        %v531 = vpop.f32.mrb[0].mxu0
        %v532 = vadd.f32 0.0, %v531
        %v533 = vpop.f32.mrb[0].mxu0
        %534 = vmatprep.mubr.f32.mxu0 0.0
        %535 = vmatmul.mubr.f32.gmra.mrb[0].mxu0 %v390
        %v536 = vpop.f32.mrb[0].mxu0
        %v537 = vadd.f32 0.0, %v536
        %v538 = vpop.f32.mrb[0].mxu0
        %539 = vmatprep.mubr.f32.mxu0 0.0
        %540 = vmatmul.mubr.f32.gmra.mrb[0].mxu0 %v391
        %v541 = vpop.f32.mrb[0].mxu0
        %v542 = vadd.f32 0.0, %v541
        %v543 = vpop.f32.mrb[0].mxu0
        %544 = vmatprep.mubr.f32.mxu0 0.0
        %545 = vmatmul.mubr.f32.gmra.mrb[0].mxu0 %v392
        %v546 = vpop.f32.mrb[0].mxu0
        %v547 = vadd.f32 0.0, %v546
        %v548 = vpop.f32.mrb[0].mxu0
        %549 = vmatprep.mubr.f32.mxu0 0.0
        %550 = vmatmul.mubr.f32.gmra.mrb[0].mxu0 %v393
        %v551 = vpop.f32.mrb[0].mxu0
        %v552 = vadd.f32 0.0, %v551
        %v553 = vpop.f32.mrb[0].mxu0
        %554 = vmatprep.mubr.f32.mxu0 0.0
        %555 = vmatmul.mubr.f32.gmra.mrb[0].mxu0 %v394
        %v556 = vpop.f32.mrb[0].mxu0
        %v557 = vadd.f32 0.0, %v556
        %v558 = vpop.f32.mrb[0].mxu0
        %559 = vmatprep.mubr.f32.mxu0 0.0
        %560 = vmatmul.mubr.f32.gmra.mrb[0].mxu0 %v395
        %v561 = vpop.f32.mrb[0].mxu0
        %v562 = vadd.f32 0.0, %v561
        %v563 = vpop.f32.mrb[0].mxu0
        %564 = vmatprep.mubr.f32.mxu0 0.0
        %565 = vmatmul.mubr.f32.gmra.mrb[0].mxu0 %v396
        %v566 = vpop.f32.mrb[0].mxu0
        %v567 = vadd.f32 0.0, %v566
        %v568 = vpop.f32.mrb[0].mxu0
        %569 = vmatprep.mubr.f32.mxu0 0.0
        %570 = vmatmul.mubr.f32.gmra.mrb[0].mxu0 %v397
        %v571 = vpop.f32.mrb[0].mxu0
        %v572 = vadd.f32 0.0, %v571
        %v573 = vpop.f32.mrb[0].mxu0
        %574 = vdwg.mxu0
        %v575 = vmul.f32 %v497, %v497
        %v576 = vmul.f32 %v502, %v502
        %v577 = vmul.f32 %v507, %v507
        %v578 = vmul.f32 %v512, %v512
        %v579 = vmul.f32 %v517, %v517
        %v580 = vmul.f32 %v522, %v522
        %v581 = vmul.f32 %v527, %v527
        %v582 = vmul.f32 %v532, %v532
        %v583 = vmul.f32 %v537, %v537
        %v584 = vmul.f32 %v542, %v542
        %v585 = vmul.f32 %v547, %v547
        %v586 = vmul.f32 %v552, %v552
        %v587 = vmul.f32 %v557, %v557
        %v588 = vmul.f32 %v562, %v562
        %v589 = vmul.f32 %v567, %v567
        %v590 = vmul.f32 %v572, %v572
        %591 = vadd.xlane.f32.xlu0 %v575
        %v592 = vpop.xlane.xlu0 %591
        %593 = vadd.xlane.f32.xlu0 %v576
        %v594 = vpop.xlane.xlu0 %593
        %595 = vadd.xlane.f32.xlu0 %v577
        %v596 = vpop.xlane.xlu0 %595
        %597 = vadd.xlane.f32.xlu0 %v578
        %v598 = vpop.xlane.xlu0 %597
        %599 = vadd.xlane.f32.xlu0 %v579
        %v600 = vpop.xlane.xlu0 %599
        %601 = vadd.xlane.f32.xlu0 %v580
        %v602 = vpop.xlane.xlu0 %601
        %603 = vadd.xlane.f32.xlu0 %v581
        %v604 = vpop.xlane.xlu0 %603
        %605 = vadd.xlane.f32.xlu0 %v582
        %v606 = vpop.xlane.xlu0 %605
        %607 = vadd.xlane.f32.xlu0 %v583
        %v608 = vpop.xlane.xlu0 %607
        %609 = vadd.xlane.f32.xlu0 %v584
        %v610 = vpop.xlane.xlu0 %609
        %611 = vadd.xlane.f32.xlu0 %v585
        %v612 = vpop.xlane.xlu0 %611
        %613 = vadd.xlane.f32.xlu0 %v586
        %v614 = vpop.xlane.xlu0 %613
        %615 = vadd.xlane.f32.xlu0 %v587
        %v616 = vpop.xlane.xlu0 %615
        %617 = vadd.xlane.f32.xlu0 %v588
        %v618 = vpop.xlane.xlu0 %617
        %619 = vadd.xlane.f32.xlu0 %v589
        %v620 = vpop.xlane.xlu0 %619
        %621 = vadd.xlane.f32.xlu0 %v590
        %v622 = vpop.xlane.xlu0 %621
        %v623 = vmax.f32 %v592, 1e-30
        %v624 = vmax.f32 %v594, 1e-30
        %v625 = vmax.f32 %v596, 1e-30
        %v626 = vmax.f32 %v598, 1e-30
        %v627 = vmax.f32 %v600, 1e-30
        %v628 = vmax.f32 %v602, 1e-30
        %v629 = vmax.f32 %v604, 1e-30
        %v630 = vmax.f32 %v606, 1e-30
        %v631 = vmax.f32 %v608, 1e-30
        %v632 = vmax.f32 %v610, 1e-30
        %v633 = vmax.f32 %v612, 1e-30
        %v634 = vmax.f32 %v614, 1e-30
        %v635 = vmax.f32 %v616, 1e-30
        %v636 = vmax.f32 %v618, 1e-30
        %v637 = vmax.f32 %v620, 1e-30
        %v638 = vmax.f32 %v622, 1e-30
        %v639 = vrsqrt.pop %v623
        %v640 = vrsqrt.pop %v624
        %v641 = vrsqrt.pop %v625
        %v642 = vrsqrt.pop %v626
        %v643 = vrsqrt.pop %v627
        %v644 = vrsqrt.pop %v628
        %v645 = vrsqrt.pop %v629
        %v646 = vrsqrt.pop %v630
        %v647 = vrsqrt.pop %v631
        %v648 = vrsqrt.pop %v632
        %v649 = vrsqrt.pop %v633
        %v650 = vrsqrt.pop %v634
        %v651 = vrsqrt.pop %v635
        %v652 = vrsqrt.pop %v636
        %v653 = vrsqrt.pop %v637
        %v654 = vrsqrt.pop %v638
        %v655 = vmul.f32 %v623, %v639
        %v656 = vmul.f32 %v624, %v640
        %v657 = vmul.f32 %v625, %v641
        %v658 = vmul.f32 %v626, %v642
        %v659 = vmul.f32 %v627, %v643
        %v660 = vmul.f32 %v628, %v644
        %v661 = vmul.f32 %v629, %v645
        %v662 = vmul.f32 %v630, %v646
        %v663 = vmul.f32 %v631, %v647
        %v664 = vmul.f32 %v632, %v648
        %v665 = vmul.f32 %v633, %v649
        %v666 = vmul.f32 %v634, %v650
        %v667 = vmul.f32 %v635, %v651
        %v668 = vmul.f32 %v636, %v652
        %v669 = vmul.f32 %v637, %v653
        %v670 = vmul.f32 %v638, %v654
        %v671 = vmul.f32 %v655, %v398
        %v672 = vmul.f32 %v656, %v399
        %v673 = vmul.f32 %v657, %v400
        %v674 = vmul.f32 %v658, %v401
        %v675 = vmul.f32 %v659, %v402
        %v676 = vmul.f32 %v660, %v403
        %v677 = vmul.f32 %v661, %v404
        %v678 = vmul.f32 %v662, %v405
        %v679 = vmul.f32 %v663, %v406
        %v680 = vmul.f32 %v664, %v407
        %v681 = vmul.f32 %v665, %v408
        %v682 = vmul.f32 %v666, %v409
        %v683 = vmul.f32 %v667, %v410
        %v684 = vmul.f32 %v668, %v411
        %v685 = vmul.f32 %v669, %v412
        %v686 = vmul.f32 %v670, %v413
        %v687 = vmax.f32 %v350, -0.9999999
        %v688 = vmax.f32 %v351, -0.9999999
        %v689 = vmax.f32 %v352, -0.9999999
        %v690 = vmax.f32 %v353, -0.9999999
        %v691 = vmax.f32 %v354, -0.9999999
        %v692 = vmax.f32 %v355, -0.9999999
        %v693 = vmax.f32 %v356, -0.9999999
        %v694 = vmax.f32 %v357, -0.9999999
        %v695 = vmax.f32 %v358, -0.9999999
        %v696 = vmax.f32 %v359, -0.9999999
        %v697 = vmax.f32 %v360, -0.9999999
        %v698 = vmax.f32 %v361, -0.9999999
        %v699 = vmax.f32 %v362, -0.9999999
        %v700 = vmax.f32 %v363, -0.9999999
        %v701 = vmax.f32 %v364, -0.9999999
        %v702 = vmax.f32 %v365, -0.9999999
        %v703 = vmin.f32 %v687, 0.9999999
        %v704 = vmin.f32 %v688, 0.9999999
        %v705 = vmin.f32 %v689, 0.9999999
        %v706 = vmin.f32 %v690, 0.9999999
        %v707 = vmin.f32 %v691, 0.9999999
        %v708 = vmin.f32 %v692, 0.9999999
        %v709 = vmin.f32 %v693, 0.9999999
        %v710 = vmin.f32 %v694, 0.9999999
        %v711 = vmin.f32 %v695, 0.9999999
        %v712 = vmin.f32 %v696, 0.9999999
        %v713 = vmin.f32 %v697, 0.9999999
        %v714 = vmin.f32 %v698, 0.9999999
        %v715 = vmin.f32 %v699, 0.9999999
        %v716 = vmin.f32 %v700, 0.9999999
        %v717 = vmin.f32 %v701, 0.9999999
        %v718 = vmin.f32 %v702, 0.9999999
        %v719 = vadd.f32 %v703, 1.0
        %v720 = vadd.f32 %v704, 1.0
        %v721 = vadd.f32 %v705, 1.0
        %v722 = vadd.f32 %v706, 1.0
        %v723 = vadd.f32 %v707, 1.0
        %v724 = vadd.f32 %v708, 1.0
        %v725 = vadd.f32 %v709, 1.0
        %v726 = vadd.f32 %v710, 1.0
        %v727 = vadd.f32 %v711, 1.0
        %v728 = vadd.f32 %v712, 1.0
        %v729 = vadd.f32 %v713, 1.0
        %v730 = vadd.f32 %v714, 1.0
        %v731 = vadd.f32 %v715, 1.0
        %v732 = vadd.f32 %v716, 1.0
        %v733 = vadd.f32 %v717, 1.0
        %v734 = vadd.f32 %v718, 1.0
        %v735 = vsub.f32 1.0, %v703
        %v736 = vsub.f32 1.0, %v704
        %v737 = vsub.f32 1.0, %v705
        %v738 = vsub.f32 1.0, %v706
        %v739 = vsub.f32 1.0, %v707
        %v740 = vsub.f32 1.0, %v708
        %v741 = vsub.f32 1.0, %v709
        %v742 = vsub.f32 1.0, %v710
        %v743 = vsub.f32 1.0, %v711
        %v744 = vsub.f32 1.0, %v712
        %v745 = vsub.f32 1.0, %v713
        %v746 = vsub.f32 1.0, %v714
        %v747 = vsub.f32 1.0, %v715
        %v748 = vsub.f32 1.0, %v716
        %v749 = vsub.f32 1.0, %v717
        %v750 = vsub.f32 1.0, %v718
        %v751 = vrcp.pop %v735
        %v752 = vmul.f32 %v719, %v751
        %v753 = vrcp.pop %v736
        %v754 = vmul.f32 %v720, %v753
        %v755 = vrcp.pop %v737
        %v756 = vmul.f32 %v721, %v755
        %v757 = vrcp.pop %v738
        %v758 = vmul.f32 %v722, %v757
        %v759 = vrcp.pop %v739
        %v760 = vmul.f32 %v723, %v759
        %v761 = vrcp.pop %v740
        %v762 = vmul.f32 %v724, %v761
        %v763 = vrcp.pop %v741
        %v764 = vmul.f32 %v725, %v763
        %v765 = vrcp.pop %v742
        %v766 = vmul.f32 %v726, %v765
        %v767 = vrcp.pop %v743
        %v768 = vmul.f32 %v727, %v767
        %v769 = vrcp.pop %v744
        %v770 = vmul.f32 %v728, %v769
        %v771 = vrcp.pop %v745
        %v772 = vmul.f32 %v729, %v771
        %v773 = vrcp.pop %v746
        %v774 = vmul.f32 %v730, %v773
        %v775 = vrcp.pop %v747
        %v776 = vmul.f32 %v731, %v775
        %v777 = vrcp.pop %v748
        %v778 = vmul.f32 %v732, %v777
        %v779 = vrcp.pop %v749
        %v780 = vmul.f32 %v733, %v779
        %v781 = vrcp.pop %v750
        %v782 = vmul.f32 %v734, %v781
        %v783 = vlog2.pop %v752
        %v784 = vmul.f32 %v783, 0.6931472
        %v785 = vlog2.pop %v754
        %v786 = vmul.f32 %v785, 0.6931472
        %v787 = vlog2.pop %v756
        %v788 = vmul.f32 %v787, 0.6931472
        %v789 = vlog2.pop %v758
        %v790 = vmul.f32 %v789, 0.6931472
        %v791 = vlog2.pop %v760
        %v792 = vmul.f32 %v791, 0.6931472
        %v793 = vlog2.pop %v762
        %v794 = vmul.f32 %v793, 0.6931472
        %v795 = vlog2.pop %v764
        %v796 = vmul.f32 %v795, 0.6931472
        %v797 = vlog2.pop %v766
        %v798 = vmul.f32 %v797, 0.6931472
        %v799 = vlog2.pop %v768
        %v800 = vmul.f32 %v799, 0.6931472
        %v801 = vlog2.pop %v770
        %v802 = vmul.f32 %v801, 0.6931472
        %v803 = vlog2.pop %v772
        %v804 = vmul.f32 %v803, 0.6931472
        %v805 = vlog2.pop %v774
        %v806 = vmul.f32 %v805, 0.6931472
        %v807 = vlog2.pop %v776
        %v808 = vmul.f32 %v807, 0.6931472
        %v809 = vlog2.pop %v778
        %v810 = vmul.f32 %v809, 0.6931472
        %v811 = vlog2.pop %v780
        %v812 = vmul.f32 %v811, 0.6931472
        %v813 = vlog2.pop %v782
        %v814 = vmul.f32 %v813, 0.6931472
        %v815 = vmul.f32 %v784, 0.5
        %v816 = vmul.f32 %v786, 0.5
        %v817 = vmul.f32 %v788, 0.5
        %v818 = vmul.f32 %v790, 0.5
        %v819 = vmul.f32 %v792, 0.5
        %v820 = vmul.f32 %v794, 0.5
        %v821 = vmul.f32 %v796, 0.5
        %v822 = vmul.f32 %v798, 0.5
        %v823 = vmul.f32 %v800, 0.5
        %v824 = vmul.f32 %v802, 0.5
        %v825 = vmul.f32 %v804, 0.5
        %v826 = vmul.f32 %v806, 0.5
        %v827 = vmul.f32 %v808, 0.5
        %v828 = vmul.f32 %v810, 0.5
        %v829 = vmul.f32 %v812, 0.5
        %v830 = vmul.f32 %v814, 0.5
        %v831 = vmul.f32 %v671, %v815
        %v832 = vmul.f32 %v672, %v816
        %v833 = vmul.f32 %v673, %v817
        %v834 = vmul.f32 %v674, %v818
        %v835 = vmul.f32 %v675, %v819
        %v836 = vmul.f32 %v676, %v820
        %v837 = vmul.f32 %v677, %v821
        %v838 = vmul.f32 %v678, %v822
        %v839 = vmul.f32 %v679, %v823
        %v840 = vmul.f32 %v680, %v824
        %v841 = vmul.f32 %v681, %v825
        %v842 = vmul.f32 %v682, %v826
        %v843 = vmul.f32 %v683, %v827
        %v844 = vmul.f32 %v684, %v828
        %v845 = vmul.f32 %v685, %v829
        %v846 = vmul.f32 %v686, %v830
        %v847 = vtanh.pop %v831
        %v848 = vtanh.pop %v832
        %v849 = vtanh.pop %v833
        %v850 = vtanh.pop %v834
        %v851 = vtanh.pop %v835
        %v852 = vtanh.pop %v836
        %v853 = vtanh.pop %v837
        %v854 = vtanh.pop %v838
        %v855 = vtanh.pop %v839
        %v856 = vtanh.pop %v840
        %v857 = vtanh.pop %v841
        %v858 = vtanh.pop %v842
        %v859 = vtanh.pop %v843
        %v860 = vtanh.pop %v844
        %v861 = vtanh.pop %v845
        %v862 = vtanh.pop %v846
        %v863 = vmin.f32 %v847, 0.996
        %v864 = vmin.f32 %v848, 0.996
        %v865 = vmin.f32 %v849, 0.996
        %v866 = vmin.f32 %v850, 0.996
        %v867 = vmin.f32 %v851, 0.996
        %v868 = vmin.f32 %v852, 0.996
        %v869 = vmin.f32 %v853, 0.996
        %v870 = vmin.f32 %v854, 0.996
        %v871 = vmin.f32 %v855, 0.996
        %v872 = vmin.f32 %v856, 0.996
        %v873 = vmin.f32 %v857, 0.996
        %v874 = vmin.f32 %v858, 0.996
        %v875 = vmin.f32 %v859, 0.996
        %v876 = vmin.f32 %v860, 0.996
        %v877 = vmin.f32 %v861, 0.996
        %v878 = vmin.f32 %v862, 0.996
        %vm879 = vcmp.le.f32.partialorder %v592, 1e-30
        %vm880 = vcmp.le.f32.partialorder %v594, 1e-30
        %vm881 = vcmp.le.f32.partialorder %v596, 1e-30
        %vm882 = vcmp.le.f32.partialorder %v598, 1e-30
        %vm883 = vcmp.le.f32.partialorder %v600, 1e-30
        %vm884 = vcmp.le.f32.partialorder %v602, 1e-30
        %vm885 = vcmp.le.f32.partialorder %v604, 1e-30
        %vm886 = vcmp.le.f32.partialorder %v606, 1e-30
        %vm887 = vcmp.le.f32.partialorder %v608, 1e-30
        %vm888 = vcmp.le.f32.partialorder %v610, 1e-30
        %vm889 = vcmp.le.f32.partialorder %v612, 1e-30
        %vm890 = vcmp.le.f32.partialorder %v614, 1e-30
        %vm891 = vcmp.le.f32.partialorder %v616, 1e-30
        %vm892 = vcmp.le.f32.partialorder %v618, 1e-30
        %vm893 = vcmp.le.f32.partialorder %v620, 1e-30
        %vm894 = vcmp.le.f32.partialorder %v622, 1e-30
        %v895 = vmul.f32 %v863, %v639
        %v896 = vmul.f32 %v864, %v640
        %v897 = vmul.f32 %v865, %v641
        %v898 = vmul.f32 %v866, %v642
        %v899 = vmul.f32 %v867, %v643
        %v900 = vmul.f32 %v868, %v644
        %v901 = vmul.f32 %v869, %v645
        %v902 = vmul.f32 %v870, %v646
        %v903 = vmul.f32 %v871, %v647
        %v904 = vmul.f32 %v872, %v648
        %v905 = vmul.f32 %v873, %v649
        %v906 = vmul.f32 %v874, %v650
        %v907 = vmul.f32 %v875, %v651
        %v908 = vmul.f32 %v876, %v652
        %v909 = vmul.f32 %v877, %v653
        %v910 = vmul.f32 %v878, %v654
        %v911 = vmul.f32 %v497, %v895
        %v912 = vmul.f32 %v502, %v896
        %v913 = vmul.f32 %v507, %v897
        %v914 = vmul.f32 %v512, %v898
        %v915 = vmul.f32 %v517, %v899
        %v916 = vmul.f32 %v522, %v900
        %v917 = vmul.f32 %v527, %v901
        %v918 = vmul.f32 %v532, %v902
        %v919 = vmul.f32 %v537, %v903
        %v920 = vmul.f32 %v542, %v904
        %v921 = vmul.f32 %v547, %v905
        %v922 = vmul.f32 %v552, %v906
        %v923 = vmul.f32 %v557, %v907
        %v924 = vmul.f32 %v562, %v908
        %v925 = vmul.f32 %v567, %v909
        %v926 = vmul.f32 %v572, %v910
        %v927 = vsel %vm879, 1, 0
        %v928 = vsel %vm880, 1, 0
        %v929 = vsel %vm881, 1, 0
        %v930 = vsel %vm882, 1, 0
        %v931 = vsel %vm883, 1, 0
        %v932 = vsel %vm884, 1, 0
        %v933 = vsel %vm885, 1, 0
        %v934 = vsel %vm886, 1, 0
        %v935 = vsel %vm887, 1, 0
        %v936 = vsel %vm888, 1, 0
        %v937 = vsel %vm889, 1, 0
        %v938 = vsel %vm890, 1, 0
        %v939 = vsel %vm891, 1, 0
        %v940 = vsel %vm892, 1, 0
        %v941 = vsel %vm893, 1, 0
        %v942 = vsel %vm894, 1, 0
        %vm943 = vcmp.eq.s32.totalorder %v927, 1
        %vm944 = vcmp.eq.s32.totalorder %v928, 1
        %vm945 = vcmp.eq.s32.totalorder %v929, 1
        %vm946 = vcmp.eq.s32.totalorder %v930, 1
        %vm947 = vcmp.eq.s32.totalorder %v931, 1
        %vm948 = vcmp.eq.s32.totalorder %v932, 1
        %vm949 = vcmp.eq.s32.totalorder %v933, 1
        %vm950 = vcmp.eq.s32.totalorder %v934, 1
        %vm951 = vcmp.eq.s32.totalorder %v935, 1
        %vm952 = vcmp.eq.s32.totalorder %v936, 1
        %vm953 = vcmp.eq.s32.totalorder %v937, 1
        %vm954 = vcmp.eq.s32.totalorder %v938, 1
        %vm955 = vcmp.eq.s32.totalorder %v939, 1
        %vm956 = vcmp.eq.s32.totalorder %v940, 1
        %vm957 = vcmp.eq.s32.totalorder %v941, 1
        %vm958 = vcmp.eq.s32.totalorder %v942, 1
        %v959 = vsel %vm943, 0.0, %v911
        %v960 = vsel %vm944, 0.0, %v912
        %v961 = vsel %vm945, 0.0, %v913
        %v962 = vsel %vm946, 0.0, %v914
        %v963 = vsel %vm947, 0.0, %v915
        %v964 = vsel %vm948, 0.0, %v916
        %v965 = vsel %vm949, 0.0, %v917
        %v966 = vsel %vm950, 0.0, %v918
        %v967 = vsel %vm951, 0.0, %v919
        %v968 = vsel %vm952, 0.0, %v920
        %v969 = vsel %vm953, 0.0, %v921
        %v970 = vsel %vm954, 0.0, %v922
        %v971 = vsel %vm955, 0.0, %v923
        %v972 = vsel %vm956, 0.0, %v924
        %v973 = vsel %vm957, 0.0, %v925
        %v974 = vsel %vm958, 0.0, %v926
        %v975 = vmul.f32 %v863, %v863
        %v976 = vmul.f32 %v864, %v864
        %v977 = vmul.f32 %v865, %v865
        %v978 = vmul.f32 %v866, %v866
        %v979 = vmul.f32 %v867, %v867
        %v980 = vmul.f32 %v868, %v868
        %v981 = vmul.f32 %v869, %v869
        %v982 = vmul.f32 %v870, %v870
        %v983 = vmul.f32 %v871, %v871
        %v984 = vmul.f32 %v872, %v872
        %v985 = vmul.f32 %v873, %v873
        %v986 = vmul.f32 %v874, %v874
        %v987 = vmul.f32 %v875, %v875
        %v988 = vmul.f32 %v876, %v876
        %v989 = vmul.f32 %v877, %v877
        %v990 = vmul.f32 %v878, %v878
        %v991 = vsel %vm879, 0.0, %v975
        %v992 = vsel %vm880, 0.0, %v976
        %v993 = vsel %vm881, 0.0, %v977
        %v994 = vsel %vm882, 0.0, %v978
        %v995 = vsel %vm883, 0.0, %v979
        %v996 = vsel %vm884, 0.0, %v980
        %v997 = vsel %vm885, 0.0, %v981
        %v998 = vsel %vm886, 0.0, %v982
        %v999 = vsel %vm887, 0.0, %v983
        %v1000 = vsel %vm888, 0.0, %v984
        %v1001 = vsel %vm889, 0.0, %v985
        %v1002 = vsel %vm890, 0.0, %v986
        %v1003 = vsel %vm891, 0.0, %v987
        %v1004 = vsel %vm892, 0.0, %v988
        %v1005 = vsel %vm893, 0.0, %v989
        %v1006 = vsel %vm894, 0.0, %v990
        %v1007 = vld [vmem:[%s2] sm:$0x1]
        %v1008 = vmul.f32 %v1007, %v1007
        %vm1009 = vcmask 1040384
        %v1010 = vsel %vm1009, %v1008, 0.0
        %1011 = vadd.xlane.f32.xlu0 %v1010
        %v1012 = vpop.xlane.xlu0 %1011
        %v1014 = vlaneseq
        %v1015 = vshrl.u32 %v1014, 7
        %v1016 = vsub.s32 0, %v1015
        %v1017 = vrot.slane %v1007, %v1016
        %v1019 = vmul.f32 %v959, %v1017
        %v1020 = vmul.f32 %v960, %v1017
        %v1021 = vmul.f32 %v961, %v1017
        %v1022 = vmul.f32 %v962, %v1017
        %v1023 = vmul.f32 %v963, %v1017
        %v1024 = vmul.f32 %v964, %v1017
        %v1025 = vmul.f32 %v965, %v1017
        %v1026 = vmul.f32 %v966, %v1017
        %v1027 = vmul.f32 %v967, %v1017
        %v1028 = vmul.f32 %v968, %v1017
        %v1029 = vmul.f32 %v969, %v1017
        %v1030 = vmul.f32 %v970, %v1017
        %v1031 = vmul.f32 %v971, %v1017
        %v1032 = vmul.f32 %v972, %v1017
        %v1033 = vmul.f32 %v973, %v1017
        %v1034 = vmul.f32 %v974, %v1017
        %1035 = vadd.xlane.f32.xlu0 %v1019
        %v1036 = vpop.xlane.xlu0 %1035
        %1037 = vadd.xlane.f32.xlu0 %v1020
        %v1038 = vpop.xlane.xlu0 %1037
        %1039 = vadd.xlane.f32.xlu0 %v1021
        %v1040 = vpop.xlane.xlu0 %1039
        %1041 = vadd.xlane.f32.xlu0 %v1022
        %v1042 = vpop.xlane.xlu0 %1041
        %1043 = vadd.xlane.f32.xlu0 %v1023
        %v1044 = vpop.xlane.xlu0 %1043
        %1045 = vadd.xlane.f32.xlu0 %v1024
        %v1046 = vpop.xlane.xlu0 %1045
        %1047 = vadd.xlane.f32.xlu0 %v1025
        %v1048 = vpop.xlane.xlu0 %1047
        %1049 = vadd.xlane.f32.xlu0 %v1026
        %v1050 = vpop.xlane.xlu0 %1049
        %1051 = vadd.xlane.f32.xlu0 %v1027
        %v1052 = vpop.xlane.xlu0 %1051
        %1053 = vadd.xlane.f32.xlu0 %v1028
        %v1054 = vpop.xlane.xlu0 %1053
        %1055 = vadd.xlane.f32.xlu0 %v1029
        %v1056 = vpop.xlane.xlu0 %1055
        %1057 = vadd.xlane.f32.xlu0 %v1030
        %v1058 = vpop.xlane.xlu0 %1057
        %1059 = vadd.xlane.f32.xlu0 %v1031
        %v1060 = vpop.xlane.xlu0 %1059
        %1061 = vadd.xlane.f32.xlu0 %v1032
        %v1062 = vpop.xlane.xlu0 %1061
        %1063 = vadd.xlane.f32.xlu0 %v1033
        %v1064 = vpop.xlane.xlu0 %1063
        %1065 = vadd.xlane.f32.xlu0 %v1034
        %v1066 = vpop.xlane.xlu0 %1065
        %v1067 = vmul.f32 %v1036, 2.0
        %v1068 = vmul.f32 %v1038, 2.0
        %v1069 = vmul.f32 %v1040, 2.0
        %v1070 = vmul.f32 %v1042, 2.0
        %v1071 = vmul.f32 %v1044, 2.0
        %v1072 = vmul.f32 %v1046, 2.0
        %v1073 = vmul.f32 %v1048, 2.0
        %v1074 = vmul.f32 %v1050, 2.0
        %v1075 = vmul.f32 %v1052, 2.0
        %v1076 = vmul.f32 %v1054, 2.0
        %v1077 = vmul.f32 %v1056, 2.0
        %v1078 = vmul.f32 %v1058, 2.0
        %v1079 = vmul.f32 %v1060, 2.0
        %v1080 = vmul.f32 %v1062, 2.0
        %v1081 = vmul.f32 %v1064, 2.0
        %v1082 = vmul.f32 %v1066, 2.0
        %v1083 = vadd.f32 %v1067, 1.0
        %v1084 = vadd.f32 %v1068, 1.0
        %v1085 = vadd.f32 %v1069, 1.0
        %v1086 = vadd.f32 %v1070, 1.0
        %v1087 = vadd.f32 %v1071, 1.0
        %v1088 = vadd.f32 %v1072, 1.0
        %v1089 = vadd.f32 %v1073, 1.0
        %v1090 = vadd.f32 %v1074, 1.0
        %v1091 = vadd.f32 %v1075, 1.0
        %v1092 = vadd.f32 %v1076, 1.0
        %v1093 = vadd.f32 %v1077, 1.0
        %v1094 = vadd.f32 %v1078, 1.0
        %v1095 = vadd.f32 %v1079, 1.0
        %v1096 = vadd.f32 %v1080, 1.0
        %v1097 = vadd.f32 %v1081, 1.0
        %v1098 = vadd.f32 %v1082, 1.0
        %v1099 = vlaneseq
        %v1100 = vshrl.u32 %v1099, 7
        %v1101 = vsub.s32 0, %v1100
        %v1102 = vrot.slane %v1012, %v1101
        %v1103 = vadd.f32 %v1083, %v1102
        %v1104 = vadd.f32 %v1084, %v1102
        %v1105 = vadd.f32 %v1085, %v1102
        %v1106 = vadd.f32 %v1086, %v1102
        %v1107 = vadd.f32 %v1087, %v1102
        %v1108 = vadd.f32 %v1088, %v1102
        %v1109 = vadd.f32 %v1089, %v1102
        %v1110 = vadd.f32 %v1090, %v1102
        %v1111 = vadd.f32 %v1091, %v1102
        %v1112 = vadd.f32 %v1092, %v1102
        %v1113 = vadd.f32 %v1093, %v1102
        %v1114 = vadd.f32 %v1094, %v1102
        %v1115 = vadd.f32 %v1095, %v1102
        %v1116 = vadd.f32 %v1096, %v1102
        %v1117 = vadd.f32 %v1097, %v1102
        %v1118 = vadd.f32 %v1098, %v1102
        %v1119 = vmul.f32 %v1103, %v959
        %v1120 = vmul.f32 %v1104, %v960
        %v1121 = vmul.f32 %v1105, %v961
        %v1122 = vmul.f32 %v1106, %v962
        %v1123 = vmul.f32 %v1107, %v963
        %v1124 = vmul.f32 %v1108, %v964
        %v1125 = vmul.f32 %v1109, %v965
        %v1126 = vmul.f32 %v1110, %v966
        %v1127 = vmul.f32 %v1111, %v967
        %v1128 = vmul.f32 %v1112, %v968
        %v1129 = vmul.f32 %v1113, %v969
        %v1130 = vmul.f32 %v1114, %v970
        %v1131 = vmul.f32 %v1115, %v971
        %v1132 = vmul.f32 %v1116, %v972
        %v1133 = vmul.f32 %v1117, %v973
        %v1134 = vmul.f32 %v1118, %v974
        %v1135 = vsub.f32 1.0, %v991
        %v1136 = vsub.f32 1.0, %v992
        %v1137 = vsub.f32 1.0, %v993
        %v1138 = vsub.f32 1.0, %v994
        %v1139 = vsub.f32 1.0, %v995
        %v1140 = vsub.f32 1.0, %v996
        %v1141 = vsub.f32 1.0, %v997
        %v1142 = vsub.f32 1.0, %v998
        %v1143 = vsub.f32 1.0, %v999
        %v1144 = vsub.f32 1.0, %v1000
        %v1145 = vsub.f32 1.0, %v1001
        %v1146 = vsub.f32 1.0, %v1002
        %v1147 = vsub.f32 1.0, %v1003
        %v1148 = vsub.f32 1.0, %v1004
        %v1149 = vsub.f32 1.0, %v1005
        %v1150 = vsub.f32 1.0, %v1006
        %v1151 = vmul.f32 %v1135, %v1017
        %v1152 = vmul.f32 %v1136, %v1017
        %v1153 = vmul.f32 %v1137, %v1017
        %v1154 = vmul.f32 %v1138, %v1017
        %v1155 = vmul.f32 %v1139, %v1017
        %v1156 = vmul.f32 %v1140, %v1017
        %v1157 = vmul.f32 %v1141, %v1017
        %v1158 = vmul.f32 %v1142, %v1017
        %v1159 = vmul.f32 %v1143, %v1017
        %v1160 = vmul.f32 %v1144, %v1017
        %v1161 = vmul.f32 %v1145, %v1017
        %v1162 = vmul.f32 %v1146, %v1017
        %v1163 = vmul.f32 %v1147, %v1017
        %v1164 = vmul.f32 %v1148, %v1017
        %v1165 = vmul.f32 %v1149, %v1017
        %v1166 = vmul.f32 %v1150, %v1017
        %v1167 = vadd.f32 %v1119, %v1151
        %v1168 = vadd.f32 %v1120, %v1152
        %v1169 = vadd.f32 %v1121, %v1153
        %v1170 = vadd.f32 %v1122, %v1154
        %v1171 = vadd.f32 %v1123, %v1155
        %v1172 = vadd.f32 %v1124, %v1156
        %v1173 = vadd.f32 %v1125, %v1157
        %v1174 = vadd.f32 %v1126, %v1158
        %v1175 = vadd.f32 %v1127, %v1159
        %v1176 = vadd.f32 %v1128, %v1160
        %v1177 = vadd.f32 %v1129, %v1161
        %v1178 = vadd.f32 %v1130, %v1162
        %v1179 = vadd.f32 %v1131, %v1163
        %v1180 = vadd.f32 %v1132, %v1164
        %v1181 = vadd.f32 %v1133, %v1165
        %v1182 = vadd.f32 %v1134, %v1166
        %v1183 = vmul.f32 %v991, %v1102
        %v1184 = vmul.f32 %v992, %v1102
        %v1185 = vmul.f32 %v993, %v1102
        %v1186 = vmul.f32 %v994, %v1102
        %v1187 = vmul.f32 %v995, %v1102
        %v1188 = vmul.f32 %v996, %v1102
        %v1189 = vmul.f32 %v997, %v1102
        %v1190 = vmul.f32 %v998, %v1102
        %v1191 = vmul.f32 %v999, %v1102
        %v1192 = vmul.f32 %v1000, %v1102
        %v1193 = vmul.f32 %v1001, %v1102
        %v1194 = vmul.f32 %v1002, %v1102
        %v1195 = vmul.f32 %v1003, %v1102
        %v1196 = vmul.f32 %v1004, %v1102
        %v1197 = vmul.f32 %v1005, %v1102
        %v1198 = vmul.f32 %v1006, %v1102
        %v1199 = vadd.f32 %v1083, %v1183
        %v1200 = vadd.f32 %v1084, %v1184
        %v1201 = vadd.f32 %v1085, %v1185
        %v1202 = vadd.f32 %v1086, %v1186
        %v1203 = vadd.f32 %v1087, %v1187
        %v1204 = vadd.f32 %v1088, %v1188
        %v1205 = vadd.f32 %v1089, %v1189
        %v1206 = vadd.f32 %v1090, %v1190
        %v1207 = vadd.f32 %v1091, %v1191
        %v1208 = vadd.f32 %v1092, %v1192
        %v1209 = vadd.f32 %v1093, %v1193
        %v1210 = vadd.f32 %v1094, %v1194
        %v1211 = vadd.f32 %v1095, %v1195
        %v1212 = vadd.f32 %v1096, %v1196
        %v1213 = vadd.f32 %v1097, %v1197
        %v1214 = vadd.f32 %v1098, %v1198
        %v1215 = vmax.f32 %v1199, 1e-15
        %v1216 = vmax.f32 %v1200, 1e-15
        %v1217 = vmax.f32 %v1201, 1e-15
        %v1218 = vmax.f32 %v1202, 1e-15
        %v1219 = vmax.f32 %v1203, 1e-15
        %v1220 = vmax.f32 %v1204, 1e-15
        %v1221 = vmax.f32 %v1205, 1e-15
        %v1222 = vmax.f32 %v1206, 1e-15
        %v1223 = vmax.f32 %v1207, 1e-15
        %v1224 = vmax.f32 %v1208, 1e-15
        %v1225 = vmax.f32 %v1209, 1e-15
        %v1226 = vmax.f32 %v1210, 1e-15
        %v1227 = vmax.f32 %v1211, 1e-15
        %v1228 = vmax.f32 %v1212, 1e-15
        %v1229 = vmax.f32 %v1213, 1e-15
        %v1230 = vmax.f32 %v1214, 1e-15
        %v1231 = vrcp.pop %v1215
        %v1232 = vrcp.pop %v1216
        %v1233 = vrcp.pop %v1217
        %v1234 = vrcp.pop %v1218
        %v1235 = vrcp.pop %v1219
        %v1236 = vrcp.pop %v1220
        %v1237 = vrcp.pop %v1221
        %v1238 = vrcp.pop %v1222
        %v1239 = vrcp.pop %v1223
        %v1240 = vrcp.pop %v1224
        %v1241 = vrcp.pop %v1225
        %v1242 = vrcp.pop %v1226
        %v1243 = vrcp.pop %v1227
        %v1244 = vrcp.pop %v1228
        %v1245 = vrcp.pop %v1229
        %v1246 = vrcp.pop %v1230
        %v1247 = vmul.f32 %v1167, %v1231
        %v1248 = vmul.f32 %v1168, %v1232
        %v1249 = vmul.f32 %v1169, %v1233
        %v1250 = vmul.f32 %v1170, %v1234
        %v1251 = vmul.f32 %v1171, %v1235
        %v1252 = vmul.f32 %v1172, %v1236
        %v1253 = vmul.f32 %v1173, %v1237
        %v1254 = vmul.f32 %v1174, %v1238
        %v1255 = vmul.f32 %v1175, %v1239
        %v1256 = vmul.f32 %v1176, %v1240
        %v1257 = vmul.f32 %v1177, %v1241
        %v1258 = vmul.f32 %v1178, %v1242
        %v1259 = vmul.f32 %v1179, %v1243
        %v1260 = vmul.f32 %v1180, %v1244
        %v1261 = vmul.f32 %v1181, %v1245
        %v1262 = vmul.f32 %v1182, %v1246
        %v1263 = vmul.f32 %v1247, %v1247
        %v1264 = vmul.f32 %v1248, %v1248
        %v1265 = vmul.f32 %v1249, %v1249
        %v1266 = vmul.f32 %v1250, %v1250
        %v1267 = vmul.f32 %v1251, %v1251
        %v1268 = vmul.f32 %v1252, %v1252
        %v1269 = vmul.f32 %v1253, %v1253
        %v1270 = vmul.f32 %v1254, %v1254
        %v1271 = vmul.f32 %v1255, %v1255
        %v1272 = vmul.f32 %v1256, %v1256
        %v1273 = vmul.f32 %v1257, %v1257
        %v1274 = vmul.f32 %v1258, %v1258
        %v1275 = vmul.f32 %v1259, %v1259
        %v1276 = vmul.f32 %v1260, %v1260
        %v1277 = vmul.f32 %v1261, %v1261
        %v1278 = vmul.f32 %v1262, %v1262
        %1279 = vadd.xlane.f32.xlu0 %v1263
        %v1280 = vpop.xlane.xlu0 %1279
        %1281 = vadd.xlane.f32.xlu0 %v1264
        %v1282 = vpop.xlane.xlu0 %1281
        %1283 = vadd.xlane.f32.xlu0 %v1265
        %v1284 = vpop.xlane.xlu0 %1283
        %1285 = vadd.xlane.f32.xlu0 %v1266
        %v1286 = vpop.xlane.xlu0 %1285
        %1287 = vadd.xlane.f32.xlu0 %v1267
        %v1288 = vpop.xlane.xlu0 %1287
        %1289 = vadd.xlane.f32.xlu0 %v1268
        %v1290 = vpop.xlane.xlu0 %1289
        %1291 = vadd.xlane.f32.xlu0 %v1269
        %v1292 = vpop.xlane.xlu0 %1291
        %1293 = vadd.xlane.f32.xlu0 %v1270
        %v1294 = vpop.xlane.xlu0 %1293
        %1295 = vadd.xlane.f32.xlu0 %v1271
        %v1296 = vpop.xlane.xlu0 %1295
        %1297 = vadd.xlane.f32.xlu0 %v1272
        %v1298 = vpop.xlane.xlu0 %1297
        %1299 = vadd.xlane.f32.xlu0 %v1273
        %v1300 = vpop.xlane.xlu0 %1299
        %1301 = vadd.xlane.f32.xlu0 %v1274
        %v1302 = vpop.xlane.xlu0 %1301
        %1303 = vadd.xlane.f32.xlu0 %v1275
        %v1304 = vpop.xlane.xlu0 %1303
        %1305 = vadd.xlane.f32.xlu0 %v1276
        %v1306 = vpop.xlane.xlu0 %1305
        %1307 = vadd.xlane.f32.xlu0 %v1277
        %v1308 = vpop.xlane.xlu0 %1307
        %1309 = vadd.xlane.f32.xlu0 %v1278
        %v1310 = vpop.xlane.xlu0 %1309
        %v1311 = vmax.f32 %v1280, 1e-30
        %v1312 = vmax.f32 %v1282, 1e-30
        %v1313 = vmax.f32 %v1284, 1e-30
        %v1314 = vmax.f32 %v1286, 1e-30
        %v1315 = vmax.f32 %v1288, 1e-30
        %v1316 = vmax.f32 %v1290, 1e-30
        %v1317 = vmax.f32 %v1292, 1e-30
        %v1318 = vmax.f32 %v1294, 1e-30
        %v1319 = vmax.f32 %v1296, 1e-30
        %v1320 = vmax.f32 %v1298, 1e-30
        %v1321 = vmax.f32 %v1300, 1e-30
        %v1322 = vmax.f32 %v1302, 1e-30
        %v1323 = vmax.f32 %v1304, 1e-30
        %v1324 = vmax.f32 %v1306, 1e-30
        %v1325 = vmax.f32 %v1308, 1e-30
        %v1326 = vmax.f32 %v1310, 1e-30
        %v1327 = vrsqrt.pop %v1311
        %v1328 = vrsqrt.pop %v1312
        %v1329 = vrsqrt.pop %v1313
        %v1330 = vrsqrt.pop %v1314
        %v1331 = vrsqrt.pop %v1315
        %v1332 = vrsqrt.pop %v1316
        %v1333 = vrsqrt.pop %v1317
        %v1334 = vrsqrt.pop %v1318
        %v1335 = vrsqrt.pop %v1319
        %v1336 = vrsqrt.pop %v1320
        %v1337 = vrsqrt.pop %v1321
        %v1338 = vrsqrt.pop %v1322
        %v1339 = vrsqrt.pop %v1323
        %v1340 = vrsqrt.pop %v1324
        %v1341 = vrsqrt.pop %v1325
        %v1342 = vrsqrt.pop %v1326
        %v1343 = vmul.f32 %v1311, %v1327
        %v1344 = vmul.f32 %v1312, %v1328
        %v1345 = vmul.f32 %v1313, %v1329
        %v1346 = vmul.f32 %v1314, %v1330
        %v1347 = vmul.f32 %v1315, %v1331
        %v1348 = vmul.f32 %v1316, %v1332
        %v1349 = vmul.f32 %v1317, %v1333
        %v1350 = vmul.f32 %v1318, %v1334
        %v1351 = vmul.f32 %v1319, %v1335
        %v1352 = vmul.f32 %v1320, %v1336
        %v1353 = vmul.f32 %v1321, %v1337
        %v1354 = vmul.f32 %v1322, %v1338
        %v1355 = vmul.f32 %v1323, %v1339
        %v1356 = vmul.f32 %v1324, %v1340
        %v1357 = vmul.f32 %v1325, %v1341
        %v1358 = vmul.f32 %v1326, %v1342
        %v1359 = vmin.f32 %v1343, 0.996
        %v1360 = vmin.f32 %v1344, 0.996
        %v1361 = vmin.f32 %v1345, 0.996
        %v1362 = vmin.f32 %v1346, 0.996
        %v1363 = vmin.f32 %v1347, 0.996
        %v1364 = vmin.f32 %v1348, 0.996
        %v1365 = vmin.f32 %v1349, 0.996
        %v1366 = vmin.f32 %v1350, 0.996
        %v1367 = vmin.f32 %v1351, 0.996
        %v1368 = vmin.f32 %v1352, 0.996
        %v1369 = vmin.f32 %v1353, 0.996
        %v1370 = vmin.f32 %v1354, 0.996
        %v1371 = vmin.f32 %v1355, 0.996
        %v1372 = vmin.f32 %v1356, 0.996
        %v1373 = vmin.f32 %v1357, 0.996
        %v1374 = vmin.f32 %v1358, 0.996
        %v1375 = vmax.f32 %v1359, -0.9999999
        %v1376 = vmax.f32 %v1360, -0.9999999
        %v1377 = vmax.f32 %v1361, -0.9999999
        %v1378 = vmax.f32 %v1362, -0.9999999
        %v1379 = vmax.f32 %v1363, -0.9999999
        %v1380 = vmax.f32 %v1364, -0.9999999
        %v1381 = vmax.f32 %v1365, -0.9999999
        %v1382 = vmax.f32 %v1366, -0.9999999
        %v1383 = vmax.f32 %v1367, -0.9999999
        %v1384 = vmax.f32 %v1368, -0.9999999
        %v1385 = vmax.f32 %v1369, -0.9999999
        %v1386 = vmax.f32 %v1370, -0.9999999
        %v1387 = vmax.f32 %v1371, -0.9999999
        %v1388 = vmax.f32 %v1372, -0.9999999
        %v1389 = vmax.f32 %v1373, -0.9999999
        %v1390 = vmax.f32 %v1374, -0.9999999
        %v1391 = vmin.f32 %v1375, 0.9999999
        %v1392 = vmin.f32 %v1376, 0.9999999
        %v1393 = vmin.f32 %v1377, 0.9999999
        %v1394 = vmin.f32 %v1378, 0.9999999
        %v1395 = vmin.f32 %v1379, 0.9999999
        %v1396 = vmin.f32 %v1380, 0.9999999
        %v1397 = vmin.f32 %v1381, 0.9999999
        %v1398 = vmin.f32 %v1382, 0.9999999
        %v1399 = vmin.f32 %v1383, 0.9999999
        %v1400 = vmin.f32 %v1384, 0.9999999
        %v1401 = vmin.f32 %v1385, 0.9999999
        %v1402 = vmin.f32 %v1386, 0.9999999
        %v1403 = vmin.f32 %v1387, 0.9999999
        %v1404 = vmin.f32 %v1388, 0.9999999
        %v1405 = vmin.f32 %v1389, 0.9999999
        %v1406 = vmin.f32 %v1390, 0.9999999
        %v1407 = vadd.f32 %v1391, 1.0
        %v1408 = vadd.f32 %v1392, 1.0
        %v1409 = vadd.f32 %v1393, 1.0
        %v1410 = vadd.f32 %v1394, 1.0
        %v1411 = vadd.f32 %v1395, 1.0
        %v1412 = vadd.f32 %v1396, 1.0
        %v1413 = vadd.f32 %v1397, 1.0
        %v1414 = vadd.f32 %v1398, 1.0
        %v1415 = vadd.f32 %v1399, 1.0
        %v1416 = vadd.f32 %v1400, 1.0
        %v1417 = vadd.f32 %v1401, 1.0
        %v1418 = vadd.f32 %v1402, 1.0
        %v1419 = vadd.f32 %v1403, 1.0
        %v1420 = vadd.f32 %v1404, 1.0
        %v1421 = vadd.f32 %v1405, 1.0
        %v1422 = vadd.f32 %v1406, 1.0
        %v1423 = vsub.f32 1.0, %v1391
        %v1424 = vsub.f32 1.0, %v1392
        %v1425 = vsub.f32 1.0, %v1393
        %v1426 = vsub.f32 1.0, %v1394
        %v1427 = vsub.f32 1.0, %v1395
        %v1428 = vsub.f32 1.0, %v1396
        %v1429 = vsub.f32 1.0, %v1397
        %v1430 = vsub.f32 1.0, %v1398
        %v1431 = vsub.f32 1.0, %v1399
        %v1432 = vsub.f32 1.0, %v1400
        %v1433 = vsub.f32 1.0, %v1401
        %v1434 = vsub.f32 1.0, %v1402
        %v1435 = vsub.f32 1.0, %v1403
        %v1436 = vsub.f32 1.0, %v1404
        %v1437 = vsub.f32 1.0, %v1405
        %v1438 = vsub.f32 1.0, %v1406
        %v1439 = vrcp.pop %v1423
        %v1440 = vmul.f32 %v1407, %v1439
        %v1441 = vrcp.pop %v1424
        %v1442 = vmul.f32 %v1408, %v1441
        %v1443 = vrcp.pop %v1425
        %v1444 = vmul.f32 %v1409, %v1443
        %v1445 = vrcp.pop %v1426
        %v1446 = vmul.f32 %v1410, %v1445
        %v1447 = vrcp.pop %v1427
        %v1448 = vmul.f32 %v1411, %v1447
        %v1449 = vrcp.pop %v1428
        %v1450 = vmul.f32 %v1412, %v1449
        %v1451 = vrcp.pop %v1429
        %v1452 = vmul.f32 %v1413, %v1451
        %v1453 = vrcp.pop %v1430
        %v1454 = vmul.f32 %v1414, %v1453
        %v1455 = vrcp.pop %v1431
        %v1456 = vmul.f32 %v1415, %v1455
        %v1457 = vrcp.pop %v1432
        %v1458 = vmul.f32 %v1416, %v1457
        %v1459 = vrcp.pop %v1433
        %v1460 = vmul.f32 %v1417, %v1459
        %v1461 = vrcp.pop %v1434
        %v1462 = vmul.f32 %v1418, %v1461
        %v1463 = vrcp.pop %v1435
        %v1464 = vmul.f32 %v1419, %v1463
        %v1465 = vrcp.pop %v1436
        %v1466 = vmul.f32 %v1420, %v1465
        %v1467 = vrcp.pop %v1437
        %v1468 = vmul.f32 %v1421, %v1467
        %v1469 = vrcp.pop %v1438
        %v1470 = vmul.f32 %v1422, %v1469
        %v1471 = vlog2.pop %v1440
        %v1472 = vmul.f32 %v1471, 0.6931472
        %v1473 = vlog2.pop %v1442
        %v1474 = vmul.f32 %v1473, 0.6931472
        %v1475 = vlog2.pop %v1444
        %v1476 = vmul.f32 %v1475, 0.6931472
        %v1477 = vlog2.pop %v1446
        %v1478 = vmul.f32 %v1477, 0.6931472
        %v1479 = vlog2.pop %v1448
        %v1480 = vmul.f32 %v1479, 0.6931472
        %v1481 = vlog2.pop %v1450
        %v1482 = vmul.f32 %v1481, 0.6931472
        %v1483 = vlog2.pop %v1452
        %v1484 = vmul.f32 %v1483, 0.6931472
        %v1485 = vlog2.pop %v1454
        %v1486 = vmul.f32 %v1485, 0.6931472
        %v1487 = vlog2.pop %v1456
        %v1488 = vmul.f32 %v1487, 0.6931472
        %v1489 = vlog2.pop %v1458
        %v1490 = vmul.f32 %v1489, 0.6931472
        %v1491 = vlog2.pop %v1460
        %v1492 = vmul.f32 %v1491, 0.6931472
        %v1493 = vlog2.pop %v1462
        %v1494 = vmul.f32 %v1493, 0.6931472
        %v1495 = vlog2.pop %v1464
        %v1496 = vmul.f32 %v1495, 0.6931472
        %v1497 = vlog2.pop %v1466
        %v1498 = vmul.f32 %v1497, 0.6931472
        %v1499 = vlog2.pop %v1468
        %v1500 = vmul.f32 %v1499, 0.6931472
        %v1501 = vlog2.pop %v1470
        %v1502 = vmul.f32 %v1501, 0.6931472
        %v1503 = vmul.f32 %v1472, 0.5
        %v1504 = vmul.f32 %v1474, 0.5
        %v1505 = vmul.f32 %v1476, 0.5
        %v1506 = vmul.f32 %v1478, 0.5
        %v1507 = vmul.f32 %v1480, 0.5
        %v1508 = vmul.f32 %v1482, 0.5
        %v1509 = vmul.f32 %v1484, 0.5
        %v1510 = vmul.f32 %v1486, 0.5
        %v1511 = vmul.f32 %v1488, 0.5
        %v1512 = vmul.f32 %v1490, 0.5
        %v1513 = vmul.f32 %v1492, 0.5
        %v1514 = vmul.f32 %v1494, 0.5
        %v1515 = vmul.f32 %v1496, 0.5
        %v1516 = vmul.f32 %v1498, 0.5
        %v1517 = vmul.f32 %v1500, 0.5
        %v1518 = vmul.f32 %v1502, 0.5
        %v1519 = vmul.f32 %v1503, %v1327
        %v1520 = vmul.f32 %v1504, %v1328
        %v1521 = vmul.f32 %v1505, %v1329
        %v1522 = vmul.f32 %v1506, %v1330
        %v1523 = vmul.f32 %v1507, %v1331
        %v1524 = vmul.f32 %v1508, %v1332
        %v1525 = vmul.f32 %v1509, %v1333
        %v1526 = vmul.f32 %v1510, %v1334
        %v1527 = vmul.f32 %v1511, %v1335
        %v1528 = vmul.f32 %v1512, %v1336
        %v1529 = vmul.f32 %v1513, %v1337
        %v1530 = vmul.f32 %v1514, %v1338
        %v1531 = vmul.f32 %v1515, %v1339
        %v1532 = vmul.f32 %v1516, %v1340
        %v1533 = vmul.f32 %v1517, %v1341
        %v1534 = vmul.f32 %v1518, %v1342
        %v1535 = vmul.f32 %v1247, %v1519
        %v1536 = vmul.f32 %v1248, %v1520
        %v1537 = vmul.f32 %v1249, %v1521
        %v1538 = vmul.f32 %v1250, %v1522
        %v1539 = vmul.f32 %v1251, %v1523
        %v1540 = vmul.f32 %v1252, %v1524
        %v1541 = vmul.f32 %v1253, %v1525
        %v1542 = vmul.f32 %v1254, %v1526
        %v1543 = vmul.f32 %v1255, %v1527
        %v1544 = vmul.f32 %v1256, %v1528
        %v1545 = vmul.f32 %v1257, %v1529
        %v1546 = vmul.f32 %v1258, %v1530
        %v1547 = vmul.f32 %v1259, %v1531
        %v1548 = vmul.f32 %v1260, %v1532
        %v1549 = vmul.f32 %v1261, %v1533
        %v1550 = vmul.f32 %v1262, %v1534
        %v1551 = vpack.c.bf16 %v1536, %v1535
        %v1552 = vpack.c.bf16 %v1538, %v1537
        %v1553 = vpack.c.bf16 %v1540, %v1539
        %v1554 = vpack.c.bf16 %v1542, %v1541
        %v1555 = vpack.c.bf16 %v1544, %v1543
        %v1556 = vpack.c.bf16 %v1546, %v1545
        %v1557 = vpack.c.bf16 %v1548, %v1547
        %v1558 = vpack.c.bf16 %v1550, %v1549
        %v1567 = vunpack.c.l.b16 %v1551
        %v1568 = vunpack.c.h.b16 %v1551
        %v1569 = vunpack.c.l.b16 %v1552
        %v1570 = vunpack.c.h.b16 %v1552
        %v1571 = vunpack.c.l.b16 %v1553
        %v1572 = vunpack.c.h.b16 %v1553
        %v1573 = vunpack.c.l.b16 %v1554
        %v1574 = vunpack.c.h.b16 %v1554
        %v1575 = vunpack.c.l.b16 %v1555
        %v1576 = vunpack.c.h.b16 %v1555
        %v1577 = vunpack.c.l.b16 %v1556
        %v1578 = vunpack.c.h.b16 %v1556
        %v1579 = vunpack.c.l.b16 %v1557
        %v1580 = vunpack.c.h.b16 %v1557
        %v1581 = vunpack.c.l.b16 %v1558
        %v1582 = vunpack.c.h.b16 %v1558
        %v1583 = vpack.c.b16 %v1567, %v1567
        %v1584 = vpack.c.b16 %v1568, %v1568
        %v1585 = vpack.c.b16 %v1569, %v1569
        %v1586 = vpack.c.b16 %v1570, %v1570
        %v1587 = vpack.c.b16 %v1571, %v1571
        %v1588 = vpack.c.b16 %v1572, %v1572
        %v1589 = vpack.c.b16 %v1573, %v1573
        %v1590 = vpack.c.b16 %v1574, %v1574
        %v1591 = vpack.c.b16 %v1575, %v1575
        %v1592 = vpack.c.b16 %v1576, %v1576
        %v1593 = vpack.c.b16 %v1577, %v1577
        %v1594 = vpack.c.b16 %v1578, %v1578
        %v1595 = vpack.c.b16 %v1579, %v1579
        %v1596 = vpack.c.b16 %v1580, %v1580
        %v1597 = vpack.c.b16 %v1581, %v1581
        %v1598 = vpack.c.b16 %v1582, %v1582
        %1615 = vst [vmem:[%s203] sm:$0xf] %v1583
        %1616 = vst [vmem:[%s203 + $0x4] sm:$0xf] %v1584
        %1617 = vst [vmem:[%s203 + $0x8] sm:$0xf] %v1585
        %1618 = vst [vmem:[%s203 + $0xc] sm:$0xf] %v1586
        %1619 = vst [vmem:[%s203 + $0x10] sm:$0xf] %v1587
        %1620 = vst [vmem:[%s203 + $0x14] sm:$0xf] %v1588
        %1621 = vst [vmem:[%s203 + $0x18] sm:$0xf] %v1589
        %1622 = vst [vmem:[%s203 + $0x1c] sm:$0xf] %v1590
        %1623 = vst [vmem:[%s203 + $0x20] sm:$0xf] %v1591
        %1624 = vst [vmem:[%s203 + $0x24] sm:$0xf] %v1592
        %1625 = vst [vmem:[%s203 + $0x28] sm:$0xf] %v1593
        %1626 = vst [vmem:[%s203 + $0x2c] sm:$0xf] %v1594
        %1627 = vst [vmem:[%s203 + $0x30] sm:$0xf] %v1595
        %1628 = vst [vmem:[%s203 + $0x34] sm:$0xf] %v1596
        %1629 = vst [vmem:[%s203 + $0x38] sm:$0xf] %v1597
        %1630 = vst [vmem:[%s203 + $0x3c] sm:$0xf] %v1598
        %s1631 = sand.u32 %s97, 1
        %s1632 = scalar_lea.sflag [#allocation4], %s1631
        %s1633 = sand.u32 %s97, 1
        %s1634 = smul.addr %s1633, 64
        %s1635 = scalar_lea.vmem [#allocation7], %s1634
        // Predicated region
        $region41: #{tpu_custom_call.1} parent=31 // pred_check
          %p1636 = pneg %p107
        $region42: #{tpu_custom_call.1} parent=31 // pred_check_branch
          %1638 = sbr.rel (%p1636) target = $region44
        $region43: #{tpu_custom_call.1} parent=31 // pred_region
          %s1639 = smul.u32 16, %s21
          %s1641 = ssub.s32 1024, 1024
          %1642 = vsyncadd %s1632, %s1641
          %s1643 = smul.addr %s1639, 64
          %s1644 = scalar_lea.hbm %s3, %s1643
          %s1645 = sshll.u32 %s1635, 4
          %s1646 = int_to_ptr.vmem [resolvable:$true] %s1645
          %1651 = dma.vmem_to_hbm [thread:$0]  %s1646, 1024, %s1644, %s1632, 64, 64, 4
        $region44: #{tpu_custom_call.1} parent=31 // pred_fallthru
          _
      $region32: #{tpu_custom_call.1} parent=5 // pred_fallthru
        _
      %p1652 = scmp.le.s32.totalorder 2, %s16
      // Predicated region
      $region45: #{tpu_custom_call.1} parent=5 // pred_check
        %p1653 = pneg %p1652
      $region46: #{tpu_custom_call.1} parent=5 // pred_check_branch
        %1655 = sbr.rel (%p1653) target = $region48
      $region47: #{tpu_custom_call.1} parent=5 // pred_region
        %s1656 = ssub.s32 %s16, 2
        // Predicated region
        $region49: #{tpu_custom_call.1} parent=47 // pred_check
          %p1657 = pneg %p113
        $region50: #{tpu_custom_call.1} parent=47 // pred_check_branch
          %1659 = sbr.rel (%p1657) target = $region52
        $region51: #{tpu_custom_call.1} parent=47 // pred_region
          %s1660 = sand.u32 %s98, 1
          %s1661 = scalar_lea.sflag [#allocation4], %s1660
          %s1662 = sand.u32 %s98, 1
          %s1663 = smul.addr %s1662, 64
          %s1664 = scalar_lea.vmem [#allocation7], %s1663
          %1665 = dma.done %s1661, 1024
        $region52: #{tpu_custom_call.1} parent=47 // pred_fallthru
          _
      $region48: #{tpu_custom_call.1} parent=5 // pred_fallthru
        _
    $region6: #{tpu_custom_call.1} parent=1 // loop_footer
      %s20 = sadd.s32 1, %s16
    $region7: #{tpu_custom_call.1} parent=1 // loop_footer_branch
      %15 = sbr.rel target = $region3
    $region8: #{tpu_custom_call.1} parent=1 // loop_exit
      _
    %1666 = vsyncpa [#allocation3], 1
    %s1667 = scalar_lea.sflag [#allocation3], 1
    %1668 = vsyncpa %s1667, 1
    %1669 = vsyncpa [#allocation6], 1
    %1670 = vsyncpa [#allocation4], 1
    %s1671 = scalar_lea.sflag [#allocation4], 1
    %1672 = vsyncpa %s1671, 1

</llo_original>
